<compile_context>
chip_gen: v5e
topology: v5e:2x2
jax: 0.10.0
libtpu: 0.0.40
codegen_flags: <defaults>
</compile_context>

<pallas_src>
import jax
import jax.numpy as jnp
from jax.experimental import pallas as pl
from jax.experimental.pallas import tpu as pltpu


# Whole (tiny) parameter arrays live in SMEM; read back as scalars in the kernel.
_SMEM_SPEC = pl.BlockSpec(memory_space=pltpu.MemorySpace.SMEM)


# -----------------------------------------------------------------------------
# Kernels
# -----------------------------------------------------------------------------
def _conv_channels(w_ref, b_ref, x_ref):
    """1x1 conv over a (1, 3, tH, W) input tile -> four (tH, W) channel planes."""
    x0 = x_ref[0, 0]
    x1 = x_ref[0, 1]
    x2 = x_ref[0, 2]

    def chan(c):
        # 3 FMAs + bias per channel, pure VPU work with SMEM scalar operands.
        return w_ref[c, 0] * x0 + w_ref[c, 1] * x1 + w_ref[c, 2] * x2 + b_ref[c]

    return chan(0), chan(1), chan(2), chan(3)


def _fused_upsample_kernel(w_ref, b_ref, x_ref, o_ref):
    """Fused 1x1 conv + PixelShuffle(2).

    x_ref: (1, 3, tH, W) VMEM tile of the NCHW input.
    o_ref: (1, 1, 2*tH, 2*W) VMEM tile of the NCHW output.
    w_ref: (4, 3) SMEM, b_ref: (4,) SMEM.
    PixelShuffle mapping (C_out=1, r=2): out[2h+i, 2w+j] = conv_channel(2*i+j)[h, w].
    """
    y00, y01, y10, y11 = _conv_channels(w_ref, b_ref, x_ref)
    th, w = y00.shape

    # Lane interleave: even output rows hold channels (0, 1), odd rows (2, 3).
    even = jnp.stack([y00, y01], axis=-1).reshape(th, 2 * w)   # [h, 2w+j] = y0j[h, w]
    odd = jnp.stack([y10, y11], axis=-1).reshape(th, 2 * w)    # [h, 2w+j] = y1j[h, w]
    # Sublane interleave of the row pairs: [2h+i, :] = (even, odd)[i][h, :].
    out = jnp.stack([even, odd], axis=1).reshape(2 * th, 2 * w)

    o_ref[0, 0] = out.astype(o_ref.dtype)


def _conv1x1_kernel(w_ref, b_ref, x_ref, y_ref):
    """Fallback kernel: 1x1 conv only; pixel shuffle is done by XLA afterwards."""
    y00, y01, y10, y11 = _conv_channels(w_ref, b_ref, x_ref)
    y_ref[0, 0] = y00.astype(y_ref.dtype)
    y_ref[0, 1] = y01.astype(y_ref.dtype)
    y_ref[0, 2] = y10.astype(y_ref.dtype)
    y_ref[0, 3] = y11.astype(y_ref.dtype)


# -----------------------------------------------------------------------------
# Tiling / pallas_call wrappers
# -----------------------------------------------------------------------------
def _pick_tile_h(n, h, w, target_step_bytes=4 * 1024 * 1024):
    """Input image rows processed per grid step.

    ~28 f32 bytes/pixel (3 in + 4 out) per step; big tiles amortize the ~0.35 us
    per-step pipeline overhead while staying well under the 32 MiB VMEM cap
    (double buffering + in-kernel temporaries included). Block sublane dims must
    be a multiple of 8 or span the full dimension.
    """
    if h <= 8:
        return h
    rows = min(h, max(8, target_step_bytes // (28 * w)))
    rows = max(8, (rows // 8) * 8)
    # Keep >= 4 grid steps when possible so both v7x TensorCores get work.
    while rows > 8 and n * pl.cdiv(h, rows) < 4:
        rows = max(8, ((rows // 2) // 8) * 8)
    return rows


def _compiler_params():
    return pltpu.CompilerParams(
        dimension_semantics=("parallel", "parallel"),
        vmem_limit_bytes=32 * 1024 * 1024,   # safe on v5e/v6e (128 MiB) and v7x (64 MiB)
    )


def _fused_call(x, weight, bias, th):
    n, cin, h, w = x.shape
    r = 2
    return pl.pallas_call(
        _fused_upsample_kernel,
        out_shape=jax.ShapeDtypeStruct((n, 1, h * r, w * r), x.dtype),
        grid=(n, pl.cdiv(h, th)),
        in_specs=[
            _SMEM_SPEC,                                               # weight (4, 3)
            _SMEM_SPEC,                                               # bias   (4,)
            pl.BlockSpec((1, cin, th, w), lambda i, j: (i, 0, j, 0)),  # NCHW input tile
        ],
        out_specs=pl.BlockSpec((1, 1, th * r, w * r), lambda i, j: (i, 0, j, 0)),
        compiler_params=_compiler_params(),
    )(weight, bias, x)


def _conv_call(x, weight, bias, th):
    n, cin, h, w = x.shape
    return pl.pallas_call(
        _conv1x1_kernel,
        out_shape=jax.ShapeDtypeStruct((n, 4, h, w), x.dtype),
        grid=(n, pl.cdiv(h, th)),
        in_specs=[
            _SMEM_SPEC,
            _SMEM_SPEC,
            pl.BlockSpec((1, cin, th, w), lambda i, j: (i, 0, j, 0)),
        ],
        out_specs=pl.BlockSpec((1, 4, th, w), lambda i, j: (i, 0, j, 0)),
        compiler_params=_compiler_params(),
    )(weight, bias, x)


def upsample_forward(x_nchw, weight, bias, upscale_factor=2):
    """Forward pass of the `upsample` module.

    x_nchw: (N, 3, H, W) f32;  weight: (4, 3) or (4, 3, 1, 1) f32;  bias: (4,) f32.
    returns (N, 1, H*2, W*2) f32.
    """
    n, cin, h, w = x_nchw.shape
    weight = jnp.asarray(weight).reshape(weight.shape[0], -1)
    bias = jnp.asarray(bias).reshape(-1)
    cout = weight.shape[0]
    r = upscale_factor
    if not (cin == 3 and cout == 4 and r == 2):
        raise NotImplementedError(
            "kernel is specialized to Conv2d(3, 4, kernel_size=1) + PixelShuffle(2)")

    th = _pick_tile_h(n, h, w)
    try:
        out = _fused_call(x_nchw, weight, bias, th)
        return jax.block_until_ready(out)
    except Exception:
        # TODO(synk): some Mosaic versions reject the in-kernel lane interleave
        # (minor-dim stack+reshape). Fall back to the same big-tile conv kernel
        # plus an XLA pixel shuffle (costs one extra HBM pass over y).
        y = _conv_call(x_nchw, weight, bias, th)
        y = y.reshape(n, 1, r, r, h, w)
        y = jnp.transpose(y, (0, 1, 4, 2, 5, 3)).reshape(n, 1, h * r, w * r)
        return y


if __name__ == "__main__":
    key = jax.random.PRNGKey(0)
    kx, kw, kb = jax.random.split(key, 3)

    N, Cin, H, W = 2, 3, 16, 16
    Cout, r = 4, 2

    x = jax.random.normal(kx, (N, Cin, H, W), dtype=jnp.float32)
    # Deterministic synthetic parameters (shapes of Conv2d(3, 4, kernel_size=1))
    weight = jax.random.normal(kw, (Cout, Cin), dtype=jnp.float32) * 0.1
    bias = jax.random.normal(kb, (Cout,), dtype=jnp.float32) * 0.1

    out = upsample_forward(x, weight, bias, upscale_factor=r)
    out = jax.block_until_ready(out)

    # Reference in plain JAX (1x1 conv + PixelShuffle, PyTorch channel ordering)
    ref_conv = jnp.einsum("nchw,oc->nohw", x, weight) + bias[None, :, None, None]
    ref = ref_conv.reshape(N, Cout // (r * r), r, r, H, W)
    ref = jnp.transpose(ref, (0, 1, 4, 2, 5, 3)).reshape(
        N, Cout // (r * r), H * r, W * r)

    assert out.shape == (N, 1, H * r, W * r), out.shape
    assert jnp.allclose(out, ref, atol=1e-5, rtol=1e-5), "mismatch vs reference"

    print("KERNEL_OK")
</pallas_src>

<mosaic_0001>
module attributes {stable_mosaic.version = 11 : i64} {
  func.func @_fused_upsample_kernel(%arg0: i32, %arg1: i32, %arg2: memref<4x3xf32, #tpu.memory_space<smem>>, %arg3: memref<4xf32, #tpu.memory_space<smem>>, %arg4: memref<1x3x8x16xf32, #tpu.memory_space<vmem>>, %arg5: memref<1x1x16x32xf32, #tpu.memory_space<vmem>>) attributes {dimension_semantics = [#tpu.dimension_semantics<parallel>, #tpu.dimension_semantics<parallel>], iteration_bounds = array<i64: 2, 2>, scalar_prefetch = 0 : i64, scratch_operands = 0 : i64, tpu.core_type = #tpu.core_type<tc>, window_params = [{transform_indices = @transform_0, window_bounds = array<i64: 4, 3>}, {transform_indices = @transform_1, window_bounds = array<i64: 4>}, {transform_indices = @transform_2, window_bounds = array<i64: 1, 3, 8, 16>}, {transform_indices = @transform_3, window_bounds = array<i64: 1, 1, 16, 32>}]} {
    %c0 = arith.constant 0 : index
    %c0_0 = arith.constant 0 : index
    %c0_1 = arith.constant 0 : index
    %c0_2 = arith.constant 0 : index
    %0 = vector.load %arg4[%c0, %c0_0, %c0_1, %c0_2] : memref<1x3x8x16xf32, #tpu.memory_space<vmem>>, vector<1x1x8x16xf32>
    %1 = vector.shape_cast %0 : vector<1x1x8x16xf32> to vector<8x16xf32>
    %c0_3 = arith.constant 0 : index
    %c1 = arith.constant 1 : index
    %c0_4 = arith.constant 0 : index
    %c0_5 = arith.constant 0 : index
    %2 = vector.load %arg4[%c0_3, %c1, %c0_4, %c0_5] : memref<1x3x8x16xf32, #tpu.memory_space<vmem>>, vector<1x1x8x16xf32>
    %3 = vector.shape_cast %2 : vector<1x1x8x16xf32> to vector<8x16xf32>
    %c0_6 = arith.constant 0 : index
    %c2 = arith.constant 2 : index
    %c0_7 = arith.constant 0 : index
    %c0_8 = arith.constant 0 : index
    %4 = vector.load %arg4[%c0_6, %c2, %c0_7, %c0_8] : memref<1x3x8x16xf32, #tpu.memory_space<vmem>>, vector<1x1x8x16xf32>
    %5 = vector.shape_cast %4 : vector<1x1x8x16xf32> to vector<8x16xf32>
    %c0_9 = arith.constant 0 : index
    %c0_10 = arith.constant 0 : index
    %6 = memref.load %arg2[%c0_9, %c0_10] : memref<4x3xf32, #tpu.memory_space<smem>>
    %7 = vector.broadcast %6 : f32 to vector<8x16xf32>
    %8 = arith.mulf %7, %1 : vector<8x16xf32>
    %c0_11 = arith.constant 0 : index
    %c1_12 = arith.constant 1 : index
    %9 = memref.load %arg2[%c0_11, %c1_12] : memref<4x3xf32, #tpu.memory_space<smem>>
    %10 = vector.broadcast %9 : f32 to vector<8x16xf32>
    %11 = arith.mulf %10, %3 : vector<8x16xf32>
    %12 = arith.addf %8, %11 : vector<8x16xf32>
    %c0_13 = arith.constant 0 : index
    %c2_14 = arith.constant 2 : index
    %13 = memref.load %arg2[%c0_13, %c2_14] : memref<4x3xf32, #tpu.memory_space<smem>>
    %14 = vector.broadcast %13 : f32 to vector<8x16xf32>
    %15 = arith.mulf %14, %5 : vector<8x16xf32>
    %16 = arith.addf %12, %15 : vector<8x16xf32>
    %c0_15 = arith.constant 0 : index
    %17 = memref.load %arg3[%c0_15] : memref<4xf32, #tpu.memory_space<smem>>
    %18 = vector.broadcast %17 : f32 to vector<8x16xf32>
    %19 = arith.addf %16, %18 : vector<8x16xf32>
    %c1_16 = arith.constant 1 : index
    %c0_17 = arith.constant 0 : index
    %20 = memref.load %arg2[%c1_16, %c0_17] : memref<4x3xf32, #tpu.memory_space<smem>>
    %21 = vector.broadcast %20 : f32 to vector<8x16xf32>
    %22 = arith.mulf %21, %1 : vector<8x16xf32>
    %c1_18 = arith.constant 1 : index
    %c1_19 = arith.constant 1 : index
    %23 = memref.load %arg2[%c1_18, %c1_19] : memref<4x3xf32, #tpu.memory_space<smem>>
    %24 = vector.broadcast %23 : f32 to vector<8x16xf32>
    %25 = arith.mulf %24, %3 : vector<8x16xf32>
    %26 = arith.addf %22, %25 : vector<8x16xf32>
    %c1_20 = arith.constant 1 : index
    %c2_21 = arith.constant 2 : index
    %27 = memref.load %arg2[%c1_20, %c2_21] : memref<4x3xf32, #tpu.memory_space<smem>>
    %28 = vector.broadcast %27 : f32 to vector<8x16xf32>
    %29 = arith.mulf %28, %5 : vector<8x16xf32>
    %30 = arith.addf %26, %29 : vector<8x16xf32>
    %c1_22 = arith.constant 1 : index
    %31 = memref.load %arg3[%c1_22] : memref<4xf32, #tpu.memory_space<smem>>
    %32 = vector.broadcast %31 : f32 to vector<8x16xf32>
    %33 = arith.addf %30, %32 : vector<8x16xf32>
    %c2_23 = arith.constant 2 : index
    %c0_24 = arith.constant 0 : index
    %34 = memref.load %arg2[%c2_23, %c0_24] : memref<4x3xf32, #tpu.memory_space<smem>>
    %35 = vector.broadcast %34 : f32 to vector<8x16xf32>
    %36 = arith.mulf %35, %1 : vector<8x16xf32>
    %c2_25 = arith.constant 2 : index
    %c1_26 = arith.constant 1 : index
    %37 = memref.load %arg2[%c2_25, %c1_26] : memref<4x3xf32, #tpu.memory_space<smem>>
    %38 = vector.broadcast %37 : f32 to vector<8x16xf32>
    %39 = arith.mulf %38, %3 : vector<8x16xf32>
    %40 = arith.addf %36, %39 : vector<8x16xf32>
    %c2_27 = arith.constant 2 : index
    %c2_28 = arith.constant 2 : index
    %41 = memref.load %arg2[%c2_27, %c2_28] : memref<4x3xf32, #tpu.memory_space<smem>>
    %42 = vector.broadcast %41 : f32 to vector<8x16xf32>
    %43 = arith.mulf %42, %5 : vector<8x16xf32>
    %44 = arith.addf %40, %43 : vector<8x16xf32>
    %c2_29 = arith.constant 2 : index
    %45 = memref.load %arg3[%c2_29] : memref<4xf32, #tpu.memory_space<smem>>
    %46 = vector.broadcast %45 : f32 to vector<8x16xf32>
    %47 = arith.addf %44, %46 : vector<8x16xf32>
    %c3 = arith.constant 3 : index
    %c0_30 = arith.constant 0 : index
    %48 = memref.load %arg2[%c3, %c0_30] : memref<4x3xf32, #tpu.memory_space<smem>>
    %49 = vector.broadcast %48 : f32 to vector<8x16xf32>
    %50 = arith.mulf %49, %1 : vector<8x16xf32>
    %c3_31 = arith.constant 3 : index
    %c1_32 = arith.constant 1 : index
    %51 = memref.load %arg2[%c3_31, %c1_32] : memref<4x3xf32, #tpu.memory_space<smem>>
    %52 = vector.broadcast %51 : f32 to vector<8x16xf32>
    %53 = arith.mulf %52, %3 : vector<8x16xf32>
    %54 = arith.addf %50, %53 : vector<8x16xf32>
    %c3_33 = arith.constant 3 : index
    %c2_34 = arith.constant 2 : index
    %55 = memref.load %arg2[%c3_33, %c2_34] : memref<4x3xf32, #tpu.memory_space<smem>>
    %56 = vector.broadcast %55 : f32 to vector<8x16xf32>
    %57 = arith.mulf %56, %5 : vector<8x16xf32>
    %58 = arith.addf %54, %57 : vector<8x16xf32>
    %c3_35 = arith.constant 3 : index
    %59 = memref.load %arg3[%c3_35] : memref<4xf32, #tpu.memory_space<smem>>
    %60 = vector.broadcast %59 : f32 to vector<8x16xf32>
    %61 = arith.addf %58, %60 : vector<8x16xf32>
    %62 = vector.shape_cast %19 : vector<8x16xf32> to vector<8x16x1xf32>
    %63 = vector.shape_cast %33 : vector<8x16xf32> to vector<8x16x1xf32>
    %64 = tpu.concatenate %62, %63 in 2 : vector<8x16x1xf32>, vector<8x16x1xf32> -> vector<8x16x2xf32>
    %65 = vector.shape_cast %64 : vector<8x16x2xf32> to vector<8x32xf32>
    %66 = vector.shape_cast %47 : vector<8x16xf32> to vector<8x16x1xf32>
    %67 = vector.shape_cast %61 : vector<8x16xf32> to vector<8x16x1xf32>
    %68 = tpu.concatenate %66, %67 in 2 : vector<8x16x1xf32>, vector<8x16x1xf32> -> vector<8x16x2xf32>
    %69 = vector.shape_cast %68 : vector<8x16x2xf32> to vector<8x32xf32>
    %70 = vector.shape_cast %65 : vector<8x32xf32> to vector<8x1x32xf32>
    %71 = vector.shape_cast %69 : vector<8x32xf32> to vector<8x1x32xf32>
    %72 = tpu.concatenate %70, %71 in 1 : vector<8x1x32xf32>, vector<8x1x32xf32> -> vector<8x2x32xf32>
    %73 = vector.shape_cast %72 : vector<8x2x32xf32> to vector<16x32xf32>
    %c0_36 = arith.constant 0 : index
    %c0_37 = arith.constant 0 : index
    %c0_38 = arith.constant 0 : index
    %c0_39 = arith.constant 0 : index
    %74 = vector.load %arg5[%c0_36, %c0_37, %c0_38, %c0_39] : memref<1x1x16x32xf32, #tpu.memory_space<vmem>>, vector<1x1x16x32xf32>
    %75 = vector.shape_cast %74 : vector<1x1x16x32xf32> to vector<16x32xf32>
    %76 = vector.shape_cast %73 : vector<16x32xf32> to vector<1x1x16x32xf32>
    tpu.vector_store %arg5[%c0_36, %c0_37, %c0_38, %c0_39], %76 {strides = array<i32>} : memref<1x1x16x32xf32, #tpu.memory_space<vmem>>, vector<1x1x16x32xf32>,
    return
  }
  func.func @transform_0(%arg0: i32, %arg1: i32) -> (i32, i32) {
    %c0_i32 = arith.constant 0 : i32
    %c0_i32_0 = arith.constant 0 : i32
    %c0_i32_1 = arith.constant 0 : i32
    return %c0_i32, %c0_i32_0 : i32, i32
  }
  func.func @transform_1(%arg0: i32, %arg1: i32) -> i32 {
    %c0_i32 = arith.constant 0 : i32
    %c0_i32_0 = arith.constant 0 : i32
    return %c0_i32 : i32
  }
  func.func @transform_2(%arg0: i32, %arg1: i32) -> (i32, i32, i32, i32) {
    %c0_i32 = arith.constant 0 : i32
    %c0_i32_0 = arith.constant 0 : i32
    %c0_i32_1 = arith.constant 0 : i32
    return %arg0, %c0_i32, %arg1, %c0_i32_0 : i32, i32, i32, i32
  }
  func.func @transform_3(%arg0: i32, %arg1: i32) -> (i32, i32, i32, i32) {
    %c0_i32 = arith.constant 0 : i32
    %c0_i32_0 = arith.constant 0 : i32
    %c0_i32_1 = arith.constant 0 : i32
    return %arg0, %c0_i32, %arg1, %c0_i32_0 : i32, i32, i32, i32
  }
}

module attributes {stable_mosaic.version = 11 : i64} {
  func.func @_conv1x1_kernel(%arg0: i32, %arg1: i32, %arg2: memref<4x3xf32, #tpu.memory_space<smem>>, %arg3: memref<4xf32, #tpu.memory_space<smem>>, %arg4: memref<1x3x8x16xf32, #tpu.memory_space<vmem>>, %arg5: memref<1x4x8x16xf32, #tpu.memory_space<vmem>>) attributes {dimension_semantics = [#tpu.dimension_semantics<parallel>, #tpu.dimension_semantics<parallel>], iteration_bounds = array<i64: 2, 2>, scalar_prefetch = 0 : i64, scratch_operands = 0 : i64, tpu.core_type = #tpu.core_type<tc>, window_params = [{transform_indices = @transform_0, window_bounds = array<i64: 4, 3>}, {transform_indices = @transform_1, window_bounds = array<i64: 4>}, {transform_indices = @transform_2, window_bounds = array<i64: 1, 3, 8, 16>}, {transform_indices = @transform_3, window_bounds = array<i64: 1, 4, 8, 16>}]} {
    %c0 = arith.constant 0 : index
    %c0_0 = arith.constant 0 : index
    %c0_1 = arith.constant 0 : index
    %c0_2 = arith.constant 0 : index
    %0 = vector.load %arg4[%c0, %c0_0, %c0_1, %c0_2] : memref<1x3x8x16xf32, #tpu.memory_space<vmem>>, vector<1x1x8x16xf32>
    %1 = vector.shape_cast %0 : vector<1x1x8x16xf32> to vector<8x16xf32>
    %c0_3 = arith.constant 0 : index
    %c1 = arith.constant 1 : index
    %c0_4 = arith.constant 0 : index
    %c0_5 = arith.constant 0 : index
    %2 = vector.load %arg4[%c0_3, %c1, %c0_4, %c0_5] : memref<1x3x8x16xf32, #tpu.memory_space<vmem>>, vector<1x1x8x16xf32>
    %3 = vector.shape_cast %2 : vector<1x1x8x16xf32> to vector<8x16xf32>
    %c0_6 = arith.constant 0 : index
    %c2 = arith.constant 2 : index
    %c0_7 = arith.constant 0 : index
    %c0_8 = arith.constant 0 : index
    %4 = vector.load %arg4[%c0_6, %c2, %c0_7, %c0_8] : memref<1x3x8x16xf32, #tpu.memory_space<vmem>>, vector<1x1x8x16xf32>
    %5 = vector.shape_cast %4 : vector<1x1x8x16xf32> to vector<8x16xf32>
    %c0_9 = arith.constant 0 : index
    %c0_10 = arith.constant 0 : index
    %6 = memref.load %arg2[%c0_9, %c0_10] : memref<4x3xf32, #tpu.memory_space<smem>>
    %7 = vector.broadcast %6 : f32 to vector<8x16xf32>
    %8 = arith.mulf %7, %1 : vector<8x16xf32>
    %c0_11 = arith.constant 0 : index
    %c1_12 = arith.constant 1 : index
    %9 = memref.load %arg2[%c0_11, %c1_12] : memref<4x3xf32, #tpu.memory_space<smem>>
    %10 = vector.broadcast %9 : f32 to vector<8x16xf32>
    %11 = arith.mulf %10, %3 : vector<8x16xf32>
    %12 = arith.addf %8, %11 : vector<8x16xf32>
    %c0_13 = arith.constant 0 : index
    %c2_14 = arith.constant 2 : index
    %13 = memref.load %arg2[%c0_13, %c2_14] : memref<4x3xf32, #tpu.memory_space<smem>>
    %14 = vector.broadcast %13 : f32 to vector<8x16xf32>
    %15 = arith.mulf %14, %5 : vector<8x16xf32>
    %16 = arith.addf %12, %15 : vector<8x16xf32>
    %c0_15 = arith.constant 0 : index
    %17 = memref.load %arg3[%c0_15] : memref<4xf32, #tpu.memory_space<smem>>
    %18 = vector.broadcast %17 : f32 to vector<8x16xf32>
    %19 = arith.addf %16, %18 : vector<8x16xf32>
    %c1_16 = arith.constant 1 : index
    %c0_17 = arith.constant 0 : index
    %20 = memref.load %arg2[%c1_16, %c0_17] : memref<4x3xf32, #tpu.memory_space<smem>>
    %21 = vector.broadcast %20 : f32 to vector<8x16xf32>
    %22 = arith.mulf %21, %1 : vector<8x16xf32>
    %c1_18 = arith.constant 1 : index
    %c1_19 = arith.constant 1 : index
    %23 = memref.load %arg2[%c1_18, %c1_19] : memref<4x3xf32, #tpu.memory_space<smem>>
    %24 = vector.broadcast %23 : f32 to vector<8x16xf32>
    %25 = arith.mulf %24, %3 : vector<8x16xf32>
    %26 = arith.addf %22, %25 : vector<8x16xf32>
    %c1_20 = arith.constant 1 : index
    %c2_21 = arith.constant 2 : index
    %27 = memref.load %arg2[%c1_20, %c2_21] : memref<4x3xf32, #tpu.memory_space<smem>>
    %28 = vector.broadcast %27 : f32 to vector<8x16xf32>
    %29 = arith.mulf %28, %5 : vector<8x16xf32>
    %30 = arith.addf %26, %29 : vector<8x16xf32>
    %c1_22 = arith.constant 1 : index
    %31 = memref.load %arg3[%c1_22] : memref<4xf32, #tpu.memory_space<smem>>
    %32 = vector.broadcast %31 : f32 to vector<8x16xf32>
    %33 = arith.addf %30, %32 : vector<8x16xf32>
    %c2_23 = arith.constant 2 : index
    %c0_24 = arith.constant 0 : index
    %34 = memref.load %arg2[%c2_23, %c0_24] : memref<4x3xf32, #tpu.memory_space<smem>>
    %35 = vector.broadcast %34 : f32 to vector<8x16xf32>
    %36 = arith.mulf %35, %1 : vector<8x16xf32>
    %c2_25 = arith.constant 2 : index
    %c1_26 = arith.constant 1 : index
    %37 = memref.load %arg2[%c2_25, %c1_26] : memref<4x3xf32, #tpu.memory_space<smem>>
    %38 = vector.broadcast %37 : f32 to vector<8x16xf32>
    %39 = arith.mulf %38, %3 : vector<8x16xf32>
    %40 = arith.addf %36, %39 : vector<8x16xf32>
    %c2_27 = arith.constant 2 : index
    %c2_28 = arith.constant 2 : index
    %41 = memref.load %arg2[%c2_27, %c2_28] : memref<4x3xf32, #tpu.memory_space<smem>>
    %42 = vector.broadcast %41 : f32 to vector<8x16xf32>
    %43 = arith.mulf %42, %5 : vector<8x16xf32>
    %44 = arith.addf %40, %43 : vector<8x16xf32>
    %c2_29 = arith.constant 2 : index
    %45 = memref.load %arg3[%c2_29] : memref<4xf32, #tpu.memory_space<smem>>
    %46 = vector.broadcast %45 : f32 to vector<8x16xf32>
    %47 = arith.addf %44, %46 : vector<8x16xf32>
    %c3 = arith.constant 3 : index
    %c0_30 = arith.constant 0 : index
    %48 = memref.load %arg2[%c3, %c0_30] : memref<4x3xf32, #tpu.memory_space<smem>>
    %49 = vector.broadcast %48 : f32 to vector<8x16xf32>
    %50 = arith.mulf %49, %1 : vector<8x16xf32>
    %c3_31 = arith.constant 3 : index
    %c1_32 = arith.constant 1 : index
    %51 = memref.load %arg2[%c3_31, %c1_32] : memref<4x3xf32, #tpu.memory_space<smem>>
    %52 = vector.broadcast %51 : f32 to vector<8x16xf32>
    %53 = arith.mulf %52, %3 : vector<8x16xf32>
    %54 = arith.addf %50, %53 : vector<8x16xf32>
    %c3_33 = arith.constant 3 : index
    %c2_34 = arith.constant 2 : index
    %55 = memref.load %arg2[%c3_33, %c2_34] : memref<4x3xf32, #tpu.memory_space<smem>>
    %56 = vector.broadcast %55 : f32 to vector<8x16xf32>
    %57 = arith.mulf %56, %5 : vector<8x16xf32>
    %58 = arith.addf %54, %57 : vector<8x16xf32>
    %c3_35 = arith.constant 3 : index
    %59 = memref.load %arg3[%c3_35] : memref<4xf32, #tpu.memory_space<smem>>
    %60 = vector.broadcast %59 : f32 to vector<8x16xf32>
    %61 = arith.addf %58, %60 : vector<8x16xf32>
    %c0_36 = arith.constant 0 : index
    %c0_37 = arith.constant 0 : index
    %c0_38 = arith.constant 0 : index
    %c0_39 = arith.constant 0 : index
    %62 = vector.load %arg5[%c0_36, %c0_37, %c0_38, %c0_39] : memref<1x4x8x16xf32, #tpu.memory_space<vmem>>, vector<1x1x8x16xf32>
    %63 = vector.shape_cast %62 : vector<1x1x8x16xf32> to vector<8x16xf32>
    %64 = vector.shape_cast %19 : vector<8x16xf32> to vector<1x1x8x16xf32>
    tpu.vector_store %arg5[%c0_36, %c0_37, %c0_38, %c0_39], %64 {strides = array<i32>} : memref<1x4x8x16xf32, #tpu.memory_space<vmem>>, vector<1x1x8x16xf32>,
    %c0_40 = arith.constant 0 : index
    %c1_41 = arith.constant 1 : index
    %c0_42 = arith.constant 0 : index
    %c0_43 = arith.constant 0 : index
    %65 = vector.load %arg5[%c0_40, %c1_41, %c0_42, %c0_43] : memref<1x4x8x16xf32, #tpu.memory_space<vmem>>, vector<1x1x8x16xf32>
    %66 = vector.shape_cast %65 : vector<1x1x8x16xf32> to vector<8x16xf32>
    %67 = vector.shape_cast %33 : vector<8x16xf32> to vector<1x1x8x16xf32>
    tpu.vector_store %arg5[%c0_40, %c1_41, %c0_42, %c0_43], %67 {strides = array<i32>} : memref<1x4x8x16xf32, #tpu.memory_space<vmem>>, vector<1x1x8x16xf32>,
    %c0_44 = arith.constant 0 : index
    %c2_45 = arith.constant 2 : index
    %c0_46 = arith.constant 0 : index
    %c0_47 = arith.constant 0 : index
    %68 = vector.load %arg5[%c0_44, %c2_45, %c0_46, %c0_47] : memref<1x4x8x16xf32, #tpu.memory_space<vmem>>, vector<1x1x8x16xf32>
    %69 = vector.shape_cast %68 : vector<1x1x8x16xf32> to vector<8x16xf32>
    %70 = vector.shape_cast %47 : vector<8x16xf32> to vector<1x1x8x16xf32>
    tpu.vector_store %arg5[%c0_44, %c2_45, %c0_46, %c0_47], %70 {strides = array<i32>} : memref<1x4x8x16xf32, #tpu.memory_space<vmem>>, vector<1x1x8x16xf32>,
    %c0_48 = arith.constant 0 : index
    %c3_49 = arith.constant 3 : index
    %c0_50 = arith.constant 0 : index
    %c0_51 = arith.constant 0 : index
    %71 = vector.load %arg5[%c0_48, %c3_49, %c0_50, %c0_51] : memref<1x4x8x16xf32, #tpu.memory_space<vmem>>, vector<1x1x8x16xf32>
    %72 = vector.shape_cast %71 : vector<1x1x8x16xf32> to vector<8x16xf32>
    %73 = vector.shape_cast %61 : vector<8x16xf32> to vector<1x1x8x16xf32>
    tpu.vector_store %arg5[%c0_48, %c3_49, %c0_50, %c0_51], %73 {strides = array<i32>} : memref<1x4x8x16xf32, #tpu.memory_space<vmem>>, vector<1x1x8x16xf32>,
    return
  }
  func.func @transform_0(%arg0: i32, %arg1: i32) -> (i32, i32) {
    %c0_i32 = arith.constant 0 : i32
    %c0_i32_0 = arith.constant 0 : i32
    %c0_i32_1 = arith.constant 0 : i32
    return %c0_i32, %c0_i32_0 : i32, i32
  }
  func.func @transform_1(%arg0: i32, %arg1: i32) -> i32 {
    %c0_i32 = arith.constant 0 : i32
    %c0_i32_0 = arith.constant 0 : i32
    return %c0_i32 : i32
  }
  func.func @transform_2(%arg0: i32, %arg1: i32) -> (i32, i32, i32, i32) {
    %c0_i32 = arith.constant 0 : i32
    %c0_i32_0 = arith.constant 0 : i32
    %c0_i32_1 = arith.constant 0 : i32
    return %arg0, %c0_i32, %arg1, %c0_i32_0 : i32, i32, i32, i32
  }
  func.func @transform_3(%arg0: i32, %arg1: i32) -> (i32, i32, i32, i32) {
    %c0_i32 = arith.constant 0 : i32
    %c0_i32_0 = arith.constant 0 : i32
    %c0_i32_1 = arith.constant 0 : i32
    return %arg0, %c0_i32, %arg1, %c0_i32_0 : i32, i32, i32, i32
  }
}

</mosaic_0001>

<llo_original>
// kernel: tpu_custom_call.1
$region0: #{tpu_custom_call.1}
  #allocation0 [shape = 'u32[]', space=smem, size = 0x4, offset = 0x4, fixed_abs, tag = 'smem constant byte address 0x4 - core index']
  #allocation1 [shape = 'u32[72,128]{1,0:T(1,128)}', space=vmem, size = 0x9000, scoped, tag = 'internal scratch']
  %s0 = inlined_call_operand.hbm [shape: f32[4,3], index: 0, kind: input, shape index: {}]
  %s1 = inlined_call_operand.hbm [shape: f32[4], index: 1, kind: input, shape index: {}]
  %s2 = inlined_call_operand.hbm [shape: f32[2,3,16,16], index: 2, kind: input, shape index: {}]
  %s3 = inlined_call_operand.hbm [shape: f32[2,1,32,32], index: 3, kind: output, shape index: {}]
  %s4 = sld [smem:[#allocation0]]
  $region57: #{tpu_custom_call.1} parent=0
    _
  %s6 = ssub.s32 1, %s4
  %s7 = scalar_select 0, %s6, %s4
  $region1: #{tpu_custom_call.1} parent=0
    #allocation2 [shape = 'u8[2048]{0}', space=smem, size = 0x800, scoped, tag = 'input window, operand 0, single buffered']
    #allocation3 [shape = 's32[2]{0}', space=sflag, size = 0x8, scoped, tag = 'scoped memory for tpu_custom_call.1']
    #allocation4 [shape = 's32[2]{0}', space=sflag, size = 0x8, scoped, tag = 'scoped memory for tpu_custom_call.1']
    #allocation5 [shape = 's32[2]{0}', space=sflag, size = 0x8, scoped, tag = 'scoped memory for tpu_custom_call.1']
    #allocation6 [shape = 'u8[512]{0}', space=smem, size = 0x200, scoped, tag = 'input window, operand 1, single buffered']
    #allocation7 [shape = 's32[1]{0}', space=sflag, size = 0x4, scoped, tag = 'scoped memory for tpu_custom_call.1']
    #allocation8 [shape = 'u8[24576]{0}', space=vmem, size = 0x6000, scoped, tag = 'input window, operand 2']
    #allocation9 [shape = 'u8[16384]{0}', space=vmem, size = 0x4000, scoped, tag = 'output window, operand 0']
    %8 = vsyncpa [#allocation5], 0
    %9 = vsyncpa [#allocation7], 0
    %10 = vsyncpa [#allocation3], 0
    %s11 = scalar_lea.sflag [#allocation3], 1
    %12 = vsyncpa %s11, 0
    %13 = vsyncpa [#allocation4], 0
    %s14 = scalar_lea.sflag [#allocation4], 1
    %15 = vsyncpa %s14, 0
    loop: start=0, step=1, limit=6
    $region2: #{tpu_custom_call.1} parent=1 // loop_pre_header
      _
    $region3: #{tpu_custom_call.1} parent=1 // loop_header
      %s17 = sphi 0, %s21
      %p18 = scmp.ge.s32.totalorder %s17, 6
      %s24 = sphi 0, %s36
      %s25 = sphi 0, %s32
      %s26 = sphi 0, %s24
      %s27 = sphi 0, %s25
      %s28 = sphi 0, %s26
      %s29 = sphi 0, %s27
      %s37 = sphi 0, %s37
      %s39 = sphi 0, %s37
      %s40 = sphi 0, %s39
      %s54 = sphi 0, %s40
      %s58 = sphi 0, %s58
      %s60 = sphi 0, %s58
      %s61 = sphi 0, %s60
      %s75 = sphi 0, %s61
      %s83 = sphi 0, %s85
      %s86 = sphi 0, %s83
      %s87 = sphi 0, %s86
      %s103 = sphi 0, %s87
      %s111 = sphi 0, %s113
      %s114 = sphi 0, %s111
      %s115 = sphi 0, %s114
      %s131 = sphi 0, %s115
    $region4: #{tpu_custom_call.1} parent=1 // loop_header_branch
      %20 = sbr.rel (%p18) target = $region8
    $region5: #{tpu_custom_call.1} parent=1 // loop_body
      %s22 = ssub.s32 %s17, 1
      %s23 = ssub.s32 %s17, 2
      %s30 = sadd.s32 1, %s25
      %p31 = scmp.ge.s32.totalorder %s30, 2
      %s32 = scalar_select %p31, 0, %s30
      %s33 = sadd.s32 1, %s24
      %s34 = scalar_select %p31, %s33, %s24
      %p35 = scmp.ge.s32.totalorder %s34, 2
      %s36 = scalar_select %p35, 0, %s34
      %s38 = sadd.s32 %s37, 1
      %p41 = scmp.eq.s32.totalorder %s17, 3
      %p42 = scmp.ne.s32.totalorder %s37, %s39
      %p43 = scmp.eq.s32.totalorder %s17, 0
      %p44 = por %p42, %p43
      %p45 = scmp.ne.s32.totalorder %s37, %s39
      %p46 = scmp.eq.s32.totalorder %s22, 3
      %p47 = por %p45, %p46
      %p48 = scmp.ne.s32.totalorder %s39, %s40
      %p49 = scmp.eq.s32.totalorder %s22, 0
      %p50 = por %p48, %p49
      %p51 = scmp.ne.s32.totalorder %s39, %s40
      %p52 = scmp.eq.s32.totalorder %s23, 3
      %p53 = por %p51, %p52
      %p55 = scmp.ne.s32.totalorder %s40, %s54
      %p56 = scmp.eq.s32.totalorder %s23, 0
      %p57 = por %p55, %p56
      %s59 = sadd.s32 %s58, 1
      %p62 = scmp.eq.s32.totalorder %s17, 3
      %p63 = scmp.ne.s32.totalorder %s58, %s60
      %p64 = scmp.eq.s32.totalorder %s17, 0
      %p65 = por %p63, %p64
      %p66 = scmp.ne.s32.totalorder %s58, %s60
      %p67 = scmp.eq.s32.totalorder %s22, 3
      %p68 = por %p66, %p67
      %p69 = scmp.ne.s32.totalorder %s60, %s61
      %p70 = scmp.eq.s32.totalorder %s22, 0
      %p71 = por %p69, %p70
      %p72 = scmp.ne.s32.totalorder %s60, %s61
      %p73 = scmp.eq.s32.totalorder %s23, 3
      %p74 = por %p72, %p73
      %p76 = scmp.ne.s32.totalorder %s61, %s75
      %p77 = scmp.eq.s32.totalorder %s23, 0
      %p78 = por %p76, %p77
      %s79 = ssub.s32 %s24, %s36
      %s80 = ssub.s32 %s25, %s32
      %s81 = sor.u32 %s79, %s80
      %p82 = scmp.eq.s32.totalorder %s81, 0
      %s84 = sadd.s32 %s83, 1
      %s85 = scalar_select %p82, %s83, %s84
      %p88 = pneg %p82
      %p89 = scmp.eq.s32.totalorder %s17, 3
      %p90 = por %p88, %p89
      %p91 = scmp.ne.s32.totalorder %s83, %s86
      %p92 = scmp.eq.s32.totalorder %s17, 0
      %p93 = por %p91, %p92
      %p94 = scmp.ne.s32.totalorder %s83, %s86
      %p95 = scmp.eq.s32.totalorder %s22, 3
      %p96 = por %p94, %p95
      %p97 = scmp.ne.s32.totalorder %s86, %s87
      %p98 = scmp.eq.s32.totalorder %s22, 0
      %p99 = por %p97, %p98
      %p100 = scmp.ne.s32.totalorder %s86, %s87
      %p101 = scmp.eq.s32.totalorder %s23, 3
      %p102 = por %p100, %p101
      %p104 = scmp.ne.s32.totalorder %s87, %s103
      %p105 = scmp.eq.s32.totalorder %s23, 0
      %p106 = por %p104, %p105
      %s107 = ssub.s32 %s24, %s36
      %s108 = ssub.s32 %s25, %s32
      %s109 = sor.u32 %s107, %s108
      %p110 = scmp.eq.s32.totalorder %s109, 0
      %s112 = sadd.s32 %s111, 1
      %s113 = scalar_select %p110, %s111, %s112
      %p116 = pneg %p110
      %p117 = scmp.eq.s32.totalorder %s17, 3
      %p118 = por %p116, %p117
      %p119 = scmp.ne.s32.totalorder %s111, %s114
      %p120 = scmp.eq.s32.totalorder %s17, 0
      %p121 = por %p119, %p120
      %p122 = scmp.ne.s32.totalorder %s111, %s114
      %p123 = scmp.eq.s32.totalorder %s22, 3
      %p124 = por %p122, %p123
      %p125 = scmp.ne.s32.totalorder %s114, %s115
      %p126 = scmp.eq.s32.totalorder %s22, 0
      %p127 = por %p125, %p126
      %p128 = scmp.ne.s32.totalorder %s114, %s115
      %p129 = scmp.eq.s32.totalorder %s23, 3
      %p130 = por %p128, %p129
      %p132 = scmp.ne.s32.totalorder %s115, %s131
      %p133 = scmp.eq.s32.totalorder %s23, 0
      %p134 = por %p132, %p133
      %p135 = scmp.le.s32.totalorder 1, %s17
      %p136 = scmp.lt.s32.totalorder %s17, 5
      %p137 = pnand %p135, %p136
      %p138 = pneg %p137
      // Predicated region
      $region9: #{tpu_custom_call.1} parent=5 // pred_check
        _
      $region10: #{tpu_custom_call.1} parent=5 // pred_check_branch
        %140 = sbr.rel (%p137) target = $region12
      $region11: #{tpu_custom_call.1} parent=5 // pred_region
        %s141 = ssub.s32 %s17, 1
        // Predicated region
        $region13: #{tpu_custom_call.1} parent=11 // pred_check
          %p142 = pneg %p50
        $region14: #{tpu_custom_call.1} parent=11 // pred_check_branch
          %144 = sbr.rel (%p142) target = $region16
        $region15: #{tpu_custom_call.1} parent=11 // pred_region
          %146 = vsyncadd [#allocation5], 0
          %s148 = sshll.u32 %s0, 4
          %s149 = int_to_ptr.hbm [resolvable:$true] %s148
          %151 = dma.hbm_to_smem %s149, 64, [#allocation2], [#allocation5]
        $region16: #{tpu_custom_call.1} parent=11 // pred_fallthru
          _
        // Predicated region
        $region17: #{tpu_custom_call.1} parent=11 // pred_check
          %p152 = pneg %p71
        $region18: #{tpu_custom_call.1} parent=11 // pred_check_branch
          %154 = sbr.rel (%p152) target = $region20
        $region19: #{tpu_custom_call.1} parent=11 // pred_region
          %156 = vsyncadd [#allocation7], 0
          %s158 = sshll.u32 %s1, 4
          %s159 = int_to_ptr.hbm [resolvable:$true] %s158
          %161 = dma.hbm_to_smem %s159, 16, [#allocation6], [#allocation7]
        $region20: #{tpu_custom_call.1} parent=11 // pred_fallthru
          _
      $region12: #{tpu_custom_call.1} parent=5 // pred_fallthru
        _
      %p162 = scmp.lt.s32.totalorder %s17, 4
      // Predicated region
      $region21: #{tpu_custom_call.1} parent=5 // pred_check
        %p163 = pneg %p162
      $region22: #{tpu_custom_call.1} parent=5 // pred_check_branch
        %165 = sbr.rel (%p163) target = $region24
      $region23: #{tpu_custom_call.1} parent=5 // pred_region
        // Predicated region
        $region25: #{tpu_custom_call.1} parent=23 // pred_check
          %p166 = pneg %p93
        $region26: #{tpu_custom_call.1} parent=23 // pred_check_branch
          %168 = sbr.rel (%p166) target = $region28
        $region27: #{tpu_custom_call.1} parent=23 // pred_region
          %s169 = sand.u32 %s83, 1
          %s170 = scalar_lea.sflag [#allocation3], %s169
          %s171 = sand.u32 %s83, 1
          %s172 = smul.addr %s171, 24
          %s173 = scalar_lea.vmem [#allocation8], %s172
          %175 = vsyncadd %s170, 0
          %s176 = smul.addr %s24, 6
          %s177 = sadd.s32 %s25, %s176
          %s178 = smul.addr %s177, 8
          %s179 = scalar_lea.hbm %s2, %s178
          %s180 = sshll.u32 %s179, 4
          %s181 = int_to_ptr.hbm [resolvable:$true] %s180
          %s182 = sshll.u32 %s173, 4
          %s183 = int_to_ptr.vmem [resolvable:$true] %s182
          %188 = dma.hbm_to_vmem [thread:$0]  %s181, 384, %s183, %s170, 256, 128, 8
        $region28: #{tpu_custom_call.1} parent=23 // pred_fallthru
          _
      $region24: #{tpu_custom_call.1} parent=5 // pred_fallthru
        _
      %p189 = scmp.le.s32.totalorder 1, %s17
      %p190 = scmp.lt.s32.totalorder %s17, 5
      %p191 = pnand %p189, %p190
      %p192 = pneg %p191
      // Predicated region
      $region29: #{tpu_custom_call.1} parent=5 // pred_check
        _
      $region30: #{tpu_custom_call.1} parent=5 // pred_check_branch
        %194 = sbr.rel (%p191) target = $region32
      $region31: #{tpu_custom_call.1} parent=5 // pred_region
        %s195 = ssub.s32 %s17, 1
        // Predicated region
        $region33: #{tpu_custom_call.1} parent=31 // pred_check
          %p196 = pneg %p50
        $region34: #{tpu_custom_call.1} parent=31 // pred_check_branch
          %198 = sbr.rel (%p196) target = $region36
        $region35: #{tpu_custom_call.1} parent=31 // pred_region
          %200 = dma.done [#allocation5], 64
        $region36: #{tpu_custom_call.1} parent=31 // pred_fallthru
          _
        // Predicated region
        $region37: #{tpu_custom_call.1} parent=31 // pred_check
          %p201 = pneg %p71
        $region38: #{tpu_custom_call.1} parent=31 // pred_check_branch
          %203 = sbr.rel (%p201) target = $region40
        $region39: #{tpu_custom_call.1} parent=31 // pred_region
          %205 = dma.done [#allocation7], 16
        $region40: #{tpu_custom_call.1} parent=31 // pred_fallthru
          _
        %s206 = sand.u32 %s86, 1
        %s207 = scalar_lea.sflag [#allocation3], %s206
        %s208 = sand.u32 %s86, 1
        %s209 = smul.addr %s208, 24
        %s210 = scalar_lea.vmem [#allocation8], %s209
        // Predicated region
        $region41: #{tpu_custom_call.1} parent=31 // pred_check
          %p211 = pneg %p99
        $region42: #{tpu_custom_call.1} parent=31 // pred_check_branch
          %213 = sbr.rel (%p211) target = $region44
        $region43: #{tpu_custom_call.1} parent=31 // pred_region
          %215 = dma.done %s207, 384
        $region44: #{tpu_custom_call.1} parent=31 // pred_fallthru
          _
        %216 = sfence
        %p217 = pneg %p50
        %p218 = pneg %p47
        %p219 = pneg %p71
        %p220 = pneg %p68
        %s221 = sand.u32 %s86, 1
        %s222 = scalar_lea.sflag [#allocation3], %s221
        %s223 = sand.u32 %s86, 1
        %s224 = smul.addr %s223, 24
        %s225 = scalar_lea.vmem [#allocation8], %s224
        %p226 = pneg %p99
        %p227 = pneg %p96
        %p228 = pneg %p127
        %p229 = pneg %p124
        %s230 = sand.u32 %s114, 1
        %s231 = scalar_lea.sflag [#allocation4], %s230
        %s232 = sand.u32 %s114, 1
        %s233 = smul.addr %s232, 16
        %s234 = scalar_lea.vmem [#allocation9], %s233
        %s235 = smul.u32 2, %s27
        %v236 = vld [vmem:[%s210] sm:$0xff]
        %s237 = scalar_lea.vmem %s210, 8 [#allocation8]
        %v238 = vld [vmem:[%s237] sm:$0xff]
        %s239 = scalar_lea.vmem %s210, 16 [#allocation8]
        %v240 = vld [vmem:[%s239] sm:$0xff]
        %s241 = sld [smem:[#allocation2]]
        %v242 = vstv %s241
        %v243 = vmul.f32 %v242, %v236
        %s244 = sld [smem:[#allocation2 + $0x1]]
        %v245 = vstv %s244
        %v246 = vmul.f32 %v245, %v238
        %v247 = vadd.f32 %v243, %v246
        %s248 = sld [smem:[#allocation2 + $0x2]]
        %v249 = vstv %s248
        %v250 = vmul.f32 %v249, %v240
        %v251 = vadd.f32 %v247, %v250
        %s252 = sld [smem:[#allocation6]]
        %v253 = vstv %s252
        %v254 = vadd.f32 %v251, %v253
        %s255 = sld [smem:[#allocation2 + $0x80]]
        %v256 = vstv %s255
        %v257 = vmul.f32 %v256, %v236
        %s258 = sld [smem:[#allocation2 + $0x81]]
        %v259 = vstv %s258
        %v260 = vmul.f32 %v259, %v238
        %v261 = vadd.f32 %v257, %v260
        %s262 = sld [smem:[#allocation2 + $0x82]]
        %v263 = vstv %s262
        %v264 = vmul.f32 %v263, %v240
        %v265 = vadd.f32 %v261, %v264
        %s266 = sld [smem:[#allocation6 + $0x1]]
        %v267 = vstv %s266
        %v268 = vadd.f32 %v265, %v267
        %s269 = sld [smem:[#allocation2 + $0x100]]
        %v270 = vstv %s269
        %v271 = vmul.f32 %v270, %v236
        %s272 = sld [smem:[#allocation2 + $0x101]]
        %v273 = vstv %s272
        %v274 = vmul.f32 %v273, %v238
        %v275 = vadd.f32 %v271, %v274
        %s276 = sld [smem:[#allocation2 + $0x102]]
        %v277 = vstv %s276
        %v278 = vmul.f32 %v277, %v240
        %v279 = vadd.f32 %v275, %v278
        %s280 = sld [smem:[#allocation6 + $0x2]]
        %v281 = vstv %s280
        %v282 = vadd.f32 %v279, %v281
        %s283 = sld [smem:[#allocation2 + $0x180]]
        %v284 = vstv %s283
        %v285 = vmul.f32 %v284, %v236
        %s286 = sld [smem:[#allocation2 + $0x181]]
        %v287 = vstv %s286
        %v288 = vmul.f32 %v287, %v238
        %v289 = vadd.f32 %v285, %v288
        %s290 = sld [smem:[#allocation2 + $0x182]]
        %v291 = vstv %s290
        %v292 = vmul.f32 %v291, %v240
        %v293 = vadd.f32 %v289, %v292
        %s294 = sld [smem:[#allocation6 + $0x3]]
        %v295 = vstv %s294
        %v296 = vadd.f32 %v293, %v295
        %v297 = vperm.slane %v254, 0
        %v298 = vlaneseq
        %v299 = vshrl.u32 %v298, 7
        %301 = vset.pattern.permute.xlu0 %v299
        %302 = vperm.xlu0 %301, %v297
        %v303 = vpop.permute.xlu0 %302
        %v304 = vlaneseq
        %v305 = vshrl.u32 %v304, 7
        %v306 = vadd.s32 %v305, 8
        %307 = vset.pattern.permute.xlu0 %v306
        %308 = vperm.xlu0 %307, %v297
        %v309 = vpop.permute.xlu0 %308
        %v310 = vperm.slane %v254, 1
        %v311 = vlaneseq
        %v312 = vshrl.u32 %v311, 7
        %314 = vset.pattern.permute.xlu0 %v312
        %315 = vperm.xlu0 %314, %v310
        %v316 = vpop.permute.xlu0 %315
        %v317 = vlaneseq
        %v318 = vshrl.u32 %v317, 7
        %v319 = vadd.s32 %v318, 8
        %320 = vset.pattern.permute.xlu0 %v319
        %321 = vperm.xlu0 %320, %v310
        %v322 = vpop.permute.xlu0 %321
        %v323 = vperm.slane %v254, 2
        %v324 = vlaneseq
        %v325 = vshrl.u32 %v324, 7
        %327 = vset.pattern.permute.xlu0 %v325
        %328 = vperm.xlu0 %327, %v323
        %v329 = vpop.permute.xlu0 %328
        %v330 = vlaneseq
        %v331 = vshrl.u32 %v330, 7
        %v332 = vadd.s32 %v331, 8
        %333 = vset.pattern.permute.xlu0 %v332
        %334 = vperm.xlu0 %333, %v323
        %v335 = vpop.permute.xlu0 %334
        %v336 = vperm.slane %v254, 3
        %v337 = vlaneseq
        %v338 = vshrl.u32 %v337, 7
        %340 = vset.pattern.permute.xlu0 %v338
        %341 = vperm.xlu0 %340, %v336
        %v342 = vpop.permute.xlu0 %341
        %v343 = vlaneseq
        %v344 = vshrl.u32 %v343, 7
        %v345 = vadd.s32 %v344, 8
        %346 = vset.pattern.permute.xlu0 %v345
        %347 = vperm.xlu0 %346, %v336
        %v348 = vpop.permute.xlu0 %347
        %v349 = vperm.slane %v254, 4
        %v350 = vlaneseq
        %v351 = vshrl.u32 %v350, 7
        %353 = vset.pattern.permute.xlu0 %v351
        %354 = vperm.xlu0 %353, %v349
        %v355 = vpop.permute.xlu0 %354
        %v356 = vlaneseq
        %v357 = vshrl.u32 %v356, 7
        %v358 = vadd.s32 %v357, 8
        %359 = vset.pattern.permute.xlu0 %v358
        %360 = vperm.xlu0 %359, %v349
        %v361 = vpop.permute.xlu0 %360
        %v362 = vperm.slane %v254, 5
        %v363 = vlaneseq
        %v364 = vshrl.u32 %v363, 7
        %366 = vset.pattern.permute.xlu0 %v364
        %367 = vperm.xlu0 %366, %v362
        %v368 = vpop.permute.xlu0 %367
        %v369 = vlaneseq
        %v370 = vshrl.u32 %v369, 7
        %v371 = vadd.s32 %v370, 8
        %372 = vset.pattern.permute.xlu0 %v371
        %373 = vperm.xlu0 %372, %v362
        %v374 = vpop.permute.xlu0 %373
        %v375 = vperm.slane %v254, 6
        %v376 = vlaneseq
        %v377 = vshrl.u32 %v376, 7
        %379 = vset.pattern.permute.xlu0 %v377
        %380 = vperm.xlu0 %379, %v375
        %v381 = vpop.permute.xlu0 %380
        %v382 = vlaneseq
        %v383 = vshrl.u32 %v382, 7
        %v384 = vadd.s32 %v383, 8
        %385 = vset.pattern.permute.xlu0 %v384
        %386 = vperm.xlu0 %385, %v375
        %v387 = vpop.permute.xlu0 %386
        %v388 = vperm.slane %v254, 7
        %v389 = vlaneseq
        %v390 = vshrl.u32 %v389, 7
        %392 = vset.pattern.permute.xlu0 %v390
        %393 = vperm.xlu0 %392, %v388
        %v394 = vpop.permute.xlu0 %393
        %v395 = vlaneseq
        %v396 = vshrl.u32 %v395, 7
        %v397 = vadd.s32 %v396, 8
        %398 = vset.pattern.permute.xlu0 %v397
        %399 = vperm.xlu0 %398, %v388
        %v400 = vpop.permute.xlu0 %399
        %v401 = vperm.slane %v268, 0
        %v402 = vlaneseq
        %v403 = vshrl.u32 %v402, 7
        %405 = vset.pattern.permute.xlu0 %v403
        %406 = vperm.xlu0 %405, %v401
        %v407 = vpop.permute.xlu0 %406
        %v408 = vlaneseq
        %v409 = vshrl.u32 %v408, 7
        %v410 = vadd.s32 %v409, 8
        %411 = vset.pattern.permute.xlu0 %v410
        %412 = vperm.xlu0 %411, %v401
        %v413 = vpop.permute.xlu0 %412
        %v414 = vperm.slane %v268, 1
        %v415 = vlaneseq
        %v416 = vshrl.u32 %v415, 7
        %418 = vset.pattern.permute.xlu0 %v416
        %419 = vperm.xlu0 %418, %v414
        %v420 = vpop.permute.xlu0 %419
        %v421 = vlaneseq
        %v422 = vshrl.u32 %v421, 7
        %v423 = vadd.s32 %v422, 8
        %424 = vset.pattern.permute.xlu0 %v423
        %425 = vperm.xlu0 %424, %v414
        %v426 = vpop.permute.xlu0 %425
        %v427 = vperm.slane %v268, 2
        %v428 = vlaneseq
        %v429 = vshrl.u32 %v428, 7
        %431 = vset.pattern.permute.xlu0 %v429
        %432 = vperm.xlu0 %431, %v427
        %v433 = vpop.permute.xlu0 %432
        %v434 = vlaneseq
        %v435 = vshrl.u32 %v434, 7
        %v436 = vadd.s32 %v435, 8
        %437 = vset.pattern.permute.xlu0 %v436
        %438 = vperm.xlu0 %437, %v427
        %v439 = vpop.permute.xlu0 %438
        %v440 = vperm.slane %v268, 3
        %v441 = vlaneseq
        %v442 = vshrl.u32 %v441, 7
        %444 = vset.pattern.permute.xlu0 %v442
        %445 = vperm.xlu0 %444, %v440
        %v446 = vpop.permute.xlu0 %445
        %v447 = vlaneseq
        %v448 = vshrl.u32 %v447, 7
        %v449 = vadd.s32 %v448, 8
        %450 = vset.pattern.permute.xlu0 %v449
        %451 = vperm.xlu0 %450, %v440
        %v452 = vpop.permute.xlu0 %451
        %v453 = vperm.slane %v268, 4
        %v454 = vlaneseq
        %v455 = vshrl.u32 %v454, 7
        %457 = vset.pattern.permute.xlu0 %v455
        %458 = vperm.xlu0 %457, %v453
        %v459 = vpop.permute.xlu0 %458
        %v460 = vlaneseq
        %v461 = vshrl.u32 %v460, 7
        %v462 = vadd.s32 %v461, 8
        %463 = vset.pattern.permute.xlu0 %v462
        %464 = vperm.xlu0 %463, %v453
        %v465 = vpop.permute.xlu0 %464
        %v466 = vperm.slane %v268, 5
        %v467 = vlaneseq
        %v468 = vshrl.u32 %v467, 7
        %470 = vset.pattern.permute.xlu0 %v468
        %471 = vperm.xlu0 %470, %v466
        %v472 = vpop.permute.xlu0 %471
        %v473 = vlaneseq
        %v474 = vshrl.u32 %v473, 7
        %v475 = vadd.s32 %v474, 8
        %476 = vset.pattern.permute.xlu0 %v475
        %477 = vperm.xlu0 %476, %v466
        %v478 = vpop.permute.xlu0 %477
        %v479 = vperm.slane %v268, 6
        %v480 = vlaneseq
        %v481 = vshrl.u32 %v480, 7
        %483 = vset.pattern.permute.xlu0 %v481
        %484 = vperm.xlu0 %483, %v479
        %v485 = vpop.permute.xlu0 %484
        %v486 = vlaneseq
        %v487 = vshrl.u32 %v486, 7
        %v488 = vadd.s32 %v487, 8
        %489 = vset.pattern.permute.xlu0 %v488
        %490 = vperm.xlu0 %489, %v479
        %v491 = vpop.permute.xlu0 %490
        %v492 = vperm.slane %v268, 7
        %v493 = vlaneseq
        %v494 = vshrl.u32 %v493, 7
        %496 = vset.pattern.permute.xlu0 %v494
        %497 = vperm.xlu0 %496, %v492
        %v498 = vpop.permute.xlu0 %497
        %v499 = vlaneseq
        %v500 = vshrl.u32 %v499, 7
        %v501 = vadd.s32 %v500, 8
        %502 = vset.pattern.permute.xlu0 %v501
        %503 = vperm.xlu0 %502, %v492
        %v504 = vpop.permute.xlu0 %503
        %vm505 = vcmask 7168
        %v506 = vsel %vm505, %v303, %v407
        %v507 = vsel %vm505, %v309, %v413
        %v508 = vsel %vm505, %v316, %v420
        %v509 = vsel %vm505, %v322, %v426
        %v510 = vsel %vm505, %v329, %v433
        %v511 = vsel %vm505, %v335, %v439
        %v512 = vsel %vm505, %v342, %v446
        %v513 = vsel %vm505, %v348, %v452
        %v514 = vsel %vm505, %v355, %v459
        %v515 = vsel %vm505, %v361, %v465
        %v516 = vsel %vm505, %v368, %v472
        %v517 = vsel %vm505, %v374, %v478
        %v518 = vsel %vm505, %v381, %v485
        %v519 = vsel %vm505, %v387, %v491
        %v520 = vsel %vm505, %v394, %v498
        %v521 = vsel %vm505, %v400, %v504
        %v522 = vperm.slane %v282, 0
        %v523 = vlaneseq
        %v524 = vshrl.u32 %v523, 7
        %526 = vset.pattern.permute.xlu0 %v524
        %527 = vperm.xlu0 %526, %v522
        %v528 = vpop.permute.xlu0 %527
        %v529 = vlaneseq
        %v530 = vshrl.u32 %v529, 7
        %v531 = vadd.s32 %v530, 8
        %532 = vset.pattern.permute.xlu0 %v531
        %533 = vperm.xlu0 %532, %v522
        %v534 = vpop.permute.xlu0 %533
        %v535 = vperm.slane %v282, 1
        %v536 = vlaneseq
        %v537 = vshrl.u32 %v536, 7
        %539 = vset.pattern.permute.xlu0 %v537
        %540 = vperm.xlu0 %539, %v535
        %v541 = vpop.permute.xlu0 %540
        %v542 = vlaneseq
        %v543 = vshrl.u32 %v542, 7
        %v544 = vadd.s32 %v543, 8
        %545 = vset.pattern.permute.xlu0 %v544
        %546 = vperm.xlu0 %545, %v535
        %v547 = vpop.permute.xlu0 %546
        %v548 = vperm.slane %v282, 2
        %v549 = vlaneseq
        %v550 = vshrl.u32 %v549, 7
        %552 = vset.pattern.permute.xlu0 %v550
        %553 = vperm.xlu0 %552, %v548
        %v554 = vpop.permute.xlu0 %553
        %v555 = vlaneseq
        %v556 = vshrl.u32 %v555, 7
        %v557 = vadd.s32 %v556, 8
        %558 = vset.pattern.permute.xlu0 %v557
        %559 = vperm.xlu0 %558, %v548
        %v560 = vpop.permute.xlu0 %559
        %v561 = vperm.slane %v282, 3
        %v562 = vlaneseq
        %v563 = vshrl.u32 %v562, 7
        %565 = vset.pattern.permute.xlu0 %v563
        %566 = vperm.xlu0 %565, %v561
        %v567 = vpop.permute.xlu0 %566
        %v568 = vlaneseq
        %v569 = vshrl.u32 %v568, 7
        %v570 = vadd.s32 %v569, 8
        %571 = vset.pattern.permute.xlu0 %v570
        %572 = vperm.xlu0 %571, %v561
        %v573 = vpop.permute.xlu0 %572
        %v574 = vperm.slane %v282, 4
        %v575 = vlaneseq
        %v576 = vshrl.u32 %v575, 7
        %578 = vset.pattern.permute.xlu0 %v576
        %579 = vperm.xlu0 %578, %v574
        %v580 = vpop.permute.xlu0 %579
        %v581 = vlaneseq
        %v582 = vshrl.u32 %v581, 7
        %v583 = vadd.s32 %v582, 8
        %584 = vset.pattern.permute.xlu0 %v583
        %585 = vperm.xlu0 %584, %v574
        %v586 = vpop.permute.xlu0 %585
        %v587 = vperm.slane %v282, 5
        %v588 = vlaneseq
        %v589 = vshrl.u32 %v588, 7
        %591 = vset.pattern.permute.xlu0 %v589
        %592 = vperm.xlu0 %591, %v587
        %v593 = vpop.permute.xlu0 %592
        %v594 = vlaneseq
        %v595 = vshrl.u32 %v594, 7
        %v596 = vadd.s32 %v595, 8
        %597 = vset.pattern.permute.xlu0 %v596
        %598 = vperm.xlu0 %597, %v587
        %v599 = vpop.permute.xlu0 %598
        %v600 = vperm.slane %v282, 6
        %v601 = vlaneseq
        %v602 = vshrl.u32 %v601, 7
        %604 = vset.pattern.permute.xlu0 %v602
        %605 = vperm.xlu0 %604, %v600
        %v606 = vpop.permute.xlu0 %605
        %v607 = vlaneseq
        %v608 = vshrl.u32 %v607, 7
        %v609 = vadd.s32 %v608, 8
        %610 = vset.pattern.permute.xlu0 %v609
        %611 = vperm.xlu0 %610, %v600
        %v612 = vpop.permute.xlu0 %611
        %v613 = vperm.slane %v282, 7
        %v614 = vlaneseq
        %v615 = vshrl.u32 %v614, 7
        %617 = vset.pattern.permute.xlu0 %v615
        %618 = vperm.xlu0 %617, %v613
        %v619 = vpop.permute.xlu0 %618
        %v620 = vlaneseq
        %v621 = vshrl.u32 %v620, 7
        %v622 = vadd.s32 %v621, 8
        %623 = vset.pattern.permute.xlu0 %v622
        %624 = vperm.xlu0 %623, %v613
        %v625 = vpop.permute.xlu0 %624
        %v626 = vperm.slane %v296, 0
        %v627 = vlaneseq
        %v628 = vshrl.u32 %v627, 7
        %630 = vset.pattern.permute.xlu0 %v628
        %631 = vperm.xlu0 %630, %v626
        %v632 = vpop.permute.xlu0 %631
        %v633 = vlaneseq
        %v634 = vshrl.u32 %v633, 7
        %v635 = vadd.s32 %v634, 8
        %636 = vset.pattern.permute.xlu0 %v635
        %637 = vperm.xlu0 %636, %v626
        %v638 = vpop.permute.xlu0 %637
        %v639 = vperm.slane %v296, 1
        %v640 = vlaneseq
        %v641 = vshrl.u32 %v640, 7
        %643 = vset.pattern.permute.xlu0 %v641
        %644 = vperm.xlu0 %643, %v639
        %v645 = vpop.permute.xlu0 %644
        %v646 = vlaneseq
        %v647 = vshrl.u32 %v646, 7
        %v648 = vadd.s32 %v647, 8
        %649 = vset.pattern.permute.xlu0 %v648
        %650 = vperm.xlu0 %649, %v639
        %v651 = vpop.permute.xlu0 %650
        %v652 = vperm.slane %v296, 2
        %v653 = vlaneseq
        %v654 = vshrl.u32 %v653, 7
        %656 = vset.pattern.permute.xlu0 %v654
        %657 = vperm.xlu0 %656, %v652
        %v658 = vpop.permute.xlu0 %657
        %v659 = vlaneseq
        %v660 = vshrl.u32 %v659, 7
        %v661 = vadd.s32 %v660, 8
        %662 = vset.pattern.permute.xlu0 %v661
        %663 = vperm.xlu0 %662, %v652
        %v664 = vpop.permute.xlu0 %663
        %v665 = vperm.slane %v296, 3
        %v666 = vlaneseq
        %v667 = vshrl.u32 %v666, 7
        %669 = vset.pattern.permute.xlu0 %v667
        %670 = vperm.xlu0 %669, %v665
        %v671 = vpop.permute.xlu0 %670
        %v672 = vlaneseq
        %v673 = vshrl.u32 %v672, 7
        %v674 = vadd.s32 %v673, 8
        %675 = vset.pattern.permute.xlu0 %v674
        %676 = vperm.xlu0 %675, %v665
        %v677 = vpop.permute.xlu0 %676
        %v678 = vperm.slane %v296, 4
        %v679 = vlaneseq
        %v680 = vshrl.u32 %v679, 7
        %682 = vset.pattern.permute.xlu0 %v680
        %683 = vperm.xlu0 %682, %v678
        %v684 = vpop.permute.xlu0 %683
        %v685 = vlaneseq
        %v686 = vshrl.u32 %v685, 7
        %v687 = vadd.s32 %v686, 8
        %688 = vset.pattern.permute.xlu0 %v687
        %689 = vperm.xlu0 %688, %v678
        %v690 = vpop.permute.xlu0 %689
        %v691 = vperm.slane %v296, 5
        %v692 = vlaneseq
        %v693 = vshrl.u32 %v692, 7
        %695 = vset.pattern.permute.xlu0 %v693
        %696 = vperm.xlu0 %695, %v691
        %v697 = vpop.permute.xlu0 %696
        %v698 = vlaneseq
        %v699 = vshrl.u32 %v698, 7
        %v700 = vadd.s32 %v699, 8
        %701 = vset.pattern.permute.xlu0 %v700
        %702 = vperm.xlu0 %701, %v691
        %v703 = vpop.permute.xlu0 %702
        %v704 = vperm.slane %v296, 6
        %v705 = vlaneseq
        %v706 = vshrl.u32 %v705, 7
        %708 = vset.pattern.permute.xlu0 %v706
        %709 = vperm.xlu0 %708, %v704
        %v710 = vpop.permute.xlu0 %709
        %v711 = vlaneseq
        %v712 = vshrl.u32 %v711, 7
        %v713 = vadd.s32 %v712, 8
        %714 = vset.pattern.permute.xlu0 %v713
        %715 = vperm.xlu0 %714, %v704
        %v716 = vpop.permute.xlu0 %715
        %v717 = vperm.slane %v296, 7
        %v718 = vlaneseq
        %v719 = vshrl.u32 %v718, 7
        %721 = vset.pattern.permute.xlu0 %v719
        %722 = vperm.xlu0 %721, %v717
        %v723 = vpop.permute.xlu0 %722
        %v724 = vlaneseq
        %v725 = vshrl.u32 %v724, 7
        %v726 = vadd.s32 %v725, 8
        %727 = vset.pattern.permute.xlu0 %v726
        %728 = vperm.xlu0 %727, %v717
        %v729 = vpop.permute.xlu0 %728
        %v730 = vsel %vm505, %v528, %v632
        %v731 = vsel %vm505, %v534, %v638
        %v732 = vsel %vm505, %v541, %v645
        %v733 = vsel %vm505, %v547, %v651
        %v734 = vsel %vm505, %v554, %v658
        %v735 = vsel %vm505, %v560, %v664
        %v736 = vsel %vm505, %v567, %v671
        %v737 = vsel %vm505, %v573, %v677
        %v738 = vsel %vm505, %v580, %v684
        %v739 = vsel %vm505, %v586, %v690
        %v740 = vsel %vm505, %v593, %v697
        %v741 = vsel %vm505, %v599, %v703
        %v742 = vsel %vm505, %v606, %v710
        %v743 = vsel %vm505, %v612, %v716
        %v744 = vsel %vm505, %v619, %v723
        %v745 = vsel %vm505, %v625, %v729
        %v746 = vrot.slane %v506, 4
        %vm747 = vcmask 1047556
        %v748 = vsel %vm747, 0.0, %v746
        %v750 = vunpack.c.l.s4 1983009808
        %v751 = vunpack.c.0.s8 %v750
        %v752 = vperm.slane %v506, %v751
        %v754 = vunpack.c.l.s4 1983009808
        %v755 = vunpack.c.0.s8 %v754
        %v756 = vperm.slane %v748, %v755
        %v757 = vrot.slane %v752, 4
        %v758 = vsel %vm747, 0.0, %v757
        %v760 = vunpack.c.l.s4 1934713408
        %v761 = vunpack.c.0.s8 %v760
        %v762 = vperm.slane %v752, %v761
        %v764 = vunpack.c.l.s4 1934713408
        %v765 = vunpack.c.0.s8 %v764
        %v766 = vperm.slane %v758, %v765
        %v767 = vrot.slane %v756, 4
        %v768 = vsel %vm747, 0.0, %v767
        %v770 = vunpack.c.l.s4 1934713408
        %v771 = vunpack.c.0.s8 %v770
        %v772 = vperm.slane %v756, %v771
        %v774 = vunpack.c.l.s4 1934713408
        %v775 = vunpack.c.0.s8 %v774
        %v776 = vperm.slane %v768, %v775
        %v777 = vrot.slane %v762, 4
        %v778 = vsel %vm747, 0.0, %v777
        %v779 = vrot.slane %v766, 4
        %v780 = vsel %vm747, 0.0, %v779
        %v781 = vrot.slane %v772, 4
        %v782 = vsel %vm747, 0.0, %v781
        %v783 = vrot.slane %v776, 4
        %v784 = vsel %vm747, 0.0, %v783
        %v785 = vrot.slane %v507, 4
        %v786 = vsel %vm747, 0.0, %v785
        %v788 = vunpack.c.l.s4 1983009808
        %v789 = vunpack.c.0.s8 %v788
        %v790 = vperm.slane %v507, %v789
        %v792 = vunpack.c.l.s4 1983009808
        %v793 = vunpack.c.0.s8 %v792
        %v794 = vperm.slane %v786, %v793
        %v795 = vrot.slane %v790, 4
        %v796 = vsel %vm747, 0.0, %v795
        %v798 = vunpack.c.l.s4 1934713408
        %v799 = vunpack.c.0.s8 %v798
        %v800 = vperm.slane %v790, %v799
        %v802 = vunpack.c.l.s4 1934713408
        %v803 = vunpack.c.0.s8 %v802
        %v804 = vperm.slane %v796, %v803
        %v805 = vrot.slane %v794, 4
        %v806 = vsel %vm747, 0.0, %v805
        %v808 = vunpack.c.l.s4 1934713408
        %v809 = vunpack.c.0.s8 %v808
        %v810 = vperm.slane %v794, %v809
        %v812 = vunpack.c.l.s4 1934713408
        %v813 = vunpack.c.0.s8 %v812
        %v814 = vperm.slane %v806, %v813
        %v815 = vrot.slane %v800, 4
        %v816 = vsel %vm747, 0.0, %v815
        %v817 = vrot.slane %v804, 4
        %v818 = vsel %vm747, 0.0, %v817
        %v819 = vrot.slane %v810, 4
        %v820 = vsel %vm747, 0.0, %v819
        %v821 = vrot.slane %v814, 4
        %v822 = vsel %vm747, 0.0, %v821
        %v823 = vrot.slane %v508, 4
        %v824 = vsel %vm747, 0.0, %v823
        %v826 = vunpack.c.l.s4 1983009808
        %v827 = vunpack.c.0.s8 %v826
        %v828 = vperm.slane %v508, %v827
        %v830 = vunpack.c.l.s4 1983009808
        %v831 = vunpack.c.0.s8 %v830
        %v832 = vperm.slane %v824, %v831
        %v833 = vrot.slane %v828, 4
        %v834 = vsel %vm747, 0.0, %v833
        %v836 = vunpack.c.l.s4 1934713408
        %v837 = vunpack.c.0.s8 %v836
        %v838 = vperm.slane %v828, %v837
        %v840 = vunpack.c.l.s4 1934713408
        %v841 = vunpack.c.0.s8 %v840
        %v842 = vperm.slane %v834, %v841
        %v843 = vrot.slane %v832, 4
        %v844 = vsel %vm747, 0.0, %v843
        %v846 = vunpack.c.l.s4 1934713408
        %v847 = vunpack.c.0.s8 %v846
        %v848 = vperm.slane %v832, %v847
        %v850 = vunpack.c.l.s4 1934713408
        %v851 = vunpack.c.0.s8 %v850
        %v852 = vperm.slane %v844, %v851
        %v853 = vrot.slane %v838, 4
        %v854 = vsel %vm747, 0.0, %v853
        %v855 = vrot.slane %v842, 4
        %v856 = vsel %vm747, 0.0, %v855
        %v857 = vrot.slane %v848, 4
        %v858 = vsel %vm747, 0.0, %v857
        %v859 = vrot.slane %v852, 4
        %v860 = vsel %vm747, 0.0, %v859
        %v861 = vrot.slane %v509, 4
        %v862 = vsel %vm747, 0.0, %v861
        %v864 = vunpack.c.l.s4 1983009808
        %v865 = vunpack.c.0.s8 %v864
        %v866 = vperm.slane %v509, %v865
        %v868 = vunpack.c.l.s4 1983009808
        %v869 = vunpack.c.0.s8 %v868
        %v870 = vperm.slane %v862, %v869
        %v871 = vrot.slane %v866, 4
        %v872 = vsel %vm747, 0.0, %v871
        %v874 = vunpack.c.l.s4 1934713408
        %v875 = vunpack.c.0.s8 %v874
        %v876 = vperm.slane %v866, %v875
        %v878 = vunpack.c.l.s4 1934713408
        %v879 = vunpack.c.0.s8 %v878
        %v880 = vperm.slane %v872, %v879
        %v881 = vrot.slane %v870, 4
        %v882 = vsel %vm747, 0.0, %v881
        %v884 = vunpack.c.l.s4 1934713408
        %v885 = vunpack.c.0.s8 %v884
        %v886 = vperm.slane %v870, %v885
        %v888 = vunpack.c.l.s4 1934713408
        %v889 = vunpack.c.0.s8 %v888
        %v890 = vperm.slane %v882, %v889
        %v891 = vrot.slane %v876, 4
        %v892 = vsel %vm747, 0.0, %v891
        %v893 = vrot.slane %v880, 4
        %v894 = vsel %vm747, 0.0, %v893
        %v895 = vrot.slane %v886, 4
        %v896 = vsel %vm747, 0.0, %v895
        %v897 = vrot.slane %v890, 4
        %v898 = vsel %vm747, 0.0, %v897
        %v899 = vrot.slane %v510, 4
        %v900 = vsel %vm747, 0.0, %v899
        %v902 = vunpack.c.l.s4 1983009808
        %v903 = vunpack.c.0.s8 %v902
        %v904 = vperm.slane %v510, %v903
        %v906 = vunpack.c.l.s4 1983009808
        %v907 = vunpack.c.0.s8 %v906
        %v908 = vperm.slane %v900, %v907
        %v909 = vrot.slane %v904, 4
        %v910 = vsel %vm747, 0.0, %v909
        %v912 = vunpack.c.l.s4 1934713408
        %v913 = vunpack.c.0.s8 %v912
        %v914 = vperm.slane %v904, %v913
        %v916 = vunpack.c.l.s4 1934713408
        %v917 = vunpack.c.0.s8 %v916
        %v918 = vperm.slane %v910, %v917
        %v919 = vrot.slane %v908, 4
        %v920 = vsel %vm747, 0.0, %v919
        %v922 = vunpack.c.l.s4 1934713408
        %v923 = vunpack.c.0.s8 %v922
        %v924 = vperm.slane %v908, %v923
        %v926 = vunpack.c.l.s4 1934713408
        %v927 = vunpack.c.0.s8 %v926
        %v928 = vperm.slane %v920, %v927
        %v929 = vrot.slane %v914, 4
        %v930 = vsel %vm747, 0.0, %v929
        %v931 = vrot.slane %v918, 4
        %v932 = vsel %vm747, 0.0, %v931
        %v933 = vrot.slane %v924, 4
        %v934 = vsel %vm747, 0.0, %v933
        %v935 = vrot.slane %v928, 4
        %v936 = vsel %vm747, 0.0, %v935
        %v937 = vrot.slane %v511, 4
        %v938 = vsel %vm747, 0.0, %v937
        %v940 = vunpack.c.l.s4 1983009808
        %v941 = vunpack.c.0.s8 %v940
        %v942 = vperm.slane %v511, %v941
        %v944 = vunpack.c.l.s4 1983009808
        %v945 = vunpack.c.0.s8 %v944
        %v946 = vperm.slane %v938, %v945
        %v947 = vrot.slane %v942, 4
        %v948 = vsel %vm747, 0.0, %v947
        %v950 = vunpack.c.l.s4 1934713408
        %v951 = vunpack.c.0.s8 %v950
        %v952 = vperm.slane %v942, %v951
        %v954 = vunpack.c.l.s4 1934713408
        %v955 = vunpack.c.0.s8 %v954
        %v956 = vperm.slane %v948, %v955
        %v957 = vrot.slane %v946, 4
        %v958 = vsel %vm747, 0.0, %v957
        %v960 = vunpack.c.l.s4 1934713408
        %v961 = vunpack.c.0.s8 %v960
        %v962 = vperm.slane %v946, %v961
        %v964 = vunpack.c.l.s4 1934713408
        %v965 = vunpack.c.0.s8 %v964
        %v966 = vperm.slane %v958, %v965
        %v967 = vrot.slane %v952, 4
        %v968 = vsel %vm747, 0.0, %v967
        %v969 = vrot.slane %v956, 4
        %v970 = vsel %vm747, 0.0, %v969
        %v971 = vrot.slane %v962, 4
        %v972 = vsel %vm747, 0.0, %v971
        %v973 = vrot.slane %v966, 4
        %v974 = vsel %vm747, 0.0, %v973
        %v975 = vrot.slane %v512, 4
        %v976 = vsel %vm747, 0.0, %v975
        %v978 = vunpack.c.l.s4 1983009808
        %v979 = vunpack.c.0.s8 %v978
        %v980 = vperm.slane %v512, %v979
        %v982 = vunpack.c.l.s4 1983009808
        %v983 = vunpack.c.0.s8 %v982
        %v984 = vperm.slane %v976, %v983
        %v985 = vrot.slane %v980, 4
        %v986 = vsel %vm747, 0.0, %v985
        %v988 = vunpack.c.l.s4 1934713408
        %v989 = vunpack.c.0.s8 %v988
        %v990 = vperm.slane %v980, %v989
        %v992 = vunpack.c.l.s4 1934713408
        %v993 = vunpack.c.0.s8 %v992
        %v994 = vperm.slane %v986, %v993
        %v995 = vrot.slane %v984, 4
        %v996 = vsel %vm747, 0.0, %v995
        %v998 = vunpack.c.l.s4 1934713408
        %v999 = vunpack.c.0.s8 %v998
        %v1000 = vperm.slane %v984, %v999
        %v1002 = vunpack.c.l.s4 1934713408
        %v1003 = vunpack.c.0.s8 %v1002
        %v1004 = vperm.slane %v996, %v1003
        %v1005 = vrot.slane %v990, 4
        %v1006 = vsel %vm747, 0.0, %v1005
        %v1007 = vrot.slane %v994, 4
        %v1008 = vsel %vm747, 0.0, %v1007
        %v1009 = vrot.slane %v1000, 4
        %v1010 = vsel %vm747, 0.0, %v1009
        %v1011 = vrot.slane %v1004, 4
        %v1012 = vsel %vm747, 0.0, %v1011
        %v1013 = vrot.slane %v513, 4
        %v1014 = vsel %vm747, 0.0, %v1013
        %v1016 = vunpack.c.l.s4 1983009808
        %v1017 = vunpack.c.0.s8 %v1016
        %v1018 = vperm.slane %v513, %v1017
        %v1020 = vunpack.c.l.s4 1983009808
        %v1021 = vunpack.c.0.s8 %v1020
        %v1022 = vperm.slane %v1014, %v1021
        %v1023 = vrot.slane %v1018, 4
        %v1024 = vsel %vm747, 0.0, %v1023
        %v1026 = vunpack.c.l.s4 1934713408
        %v1027 = vunpack.c.0.s8 %v1026
        %v1028 = vperm.slane %v1018, %v1027
        %v1030 = vunpack.c.l.s4 1934713408
        %v1031 = vunpack.c.0.s8 %v1030
        %v1032 = vperm.slane %v1024, %v1031
        %v1033 = vrot.slane %v1022, 4
        %v1034 = vsel %vm747, 0.0, %v1033
        %v1036 = vunpack.c.l.s4 1934713408
        %v1037 = vunpack.c.0.s8 %v1036
        %v1038 = vperm.slane %v1022, %v1037
        %v1040 = vunpack.c.l.s4 1934713408
        %v1041 = vunpack.c.0.s8 %v1040
        %v1042 = vperm.slane %v1034, %v1041
        %v1043 = vrot.slane %v1028, 4
        %v1044 = vsel %vm747, 0.0, %v1043
        %v1045 = vrot.slane %v1032, 4
        %v1046 = vsel %vm747, 0.0, %v1045
        %v1047 = vrot.slane %v1038, 4
        %v1048 = vsel %vm747, 0.0, %v1047
        %v1049 = vrot.slane %v1042, 4
        %v1050 = vsel %vm747, 0.0, %v1049
        %v1051 = vrot.slane %v514, 4
        %v1052 = vsel %vm747, 0.0, %v1051
        %v1054 = vunpack.c.l.s4 1983009808
        %v1055 = vunpack.c.0.s8 %v1054
        %v1056 = vperm.slane %v514, %v1055
        %v1058 = vunpack.c.l.s4 1983009808
        %v1059 = vunpack.c.0.s8 %v1058
        %v1060 = vperm.slane %v1052, %v1059
        %v1061 = vrot.slane %v1056, 4
        %v1062 = vsel %vm747, 0.0, %v1061
        %v1064 = vunpack.c.l.s4 1934713408
        %v1065 = vunpack.c.0.s8 %v1064
        %v1066 = vperm.slane %v1056, %v1065
        %v1068 = vunpack.c.l.s4 1934713408
        %v1069 = vunpack.c.0.s8 %v1068
        %v1070 = vperm.slane %v1062, %v1069
        %v1071 = vrot.slane %v1060, 4
        %v1072 = vsel %vm747, 0.0, %v1071
        %v1074 = vunpack.c.l.s4 1934713408
        %v1075 = vunpack.c.0.s8 %v1074
        %v1076 = vperm.slane %v1060, %v1075
        %v1078 = vunpack.c.l.s4 1934713408
        %v1079 = vunpack.c.0.s8 %v1078
        %v1080 = vperm.slane %v1072, %v1079
        %v1081 = vrot.slane %v1066, 4
        %v1082 = vsel %vm747, 0.0, %v1081
        %v1083 = vrot.slane %v1070, 4
        %v1084 = vsel %vm747, 0.0, %v1083
        %v1085 = vrot.slane %v1076, 4
        %v1086 = vsel %vm747, 0.0, %v1085
        %v1087 = vrot.slane %v1080, 4
        %v1088 = vsel %vm747, 0.0, %v1087
        %v1089 = vrot.slane %v515, 4
        %v1090 = vsel %vm747, 0.0, %v1089
        %v1092 = vunpack.c.l.s4 1983009808
        %v1093 = vunpack.c.0.s8 %v1092
        %v1094 = vperm.slane %v515, %v1093
        %v1096 = vunpack.c.l.s4 1983009808
        %v1097 = vunpack.c.0.s8 %v1096
        %v1098 = vperm.slane %v1090, %v1097
        %v1099 = vrot.slane %v1094, 4
        %v1100 = vsel %vm747, 0.0, %v1099
        %v1102 = vunpack.c.l.s4 1934713408
        %v1103 = vunpack.c.0.s8 %v1102
        %v1104 = vperm.slane %v1094, %v1103
        %v1106 = vunpack.c.l.s4 1934713408
        %v1107 = vunpack.c.0.s8 %v1106
        %v1108 = vperm.slane %v1100, %v1107
        %v1109 = vrot.slane %v1098, 4
        %v1110 = vsel %vm747, 0.0, %v1109
        %v1112 = vunpack.c.l.s4 1934713408
        %v1113 = vunpack.c.0.s8 %v1112
        %v1114 = vperm.slane %v1098, %v1113
        %v1116 = vunpack.c.l.s4 1934713408
        %v1117 = vunpack.c.0.s8 %v1116
        %v1118 = vperm.slane %v1110, %v1117
        %v1119 = vrot.slane %v1104, 4
        %v1120 = vsel %vm747, 0.0, %v1119
        %v1121 = vrot.slane %v1108, 4
        %v1122 = vsel %vm747, 0.0, %v1121
        %v1123 = vrot.slane %v1114, 4
        %v1124 = vsel %vm747, 0.0, %v1123
        %v1125 = vrot.slane %v1118, 4
        %v1126 = vsel %vm747, 0.0, %v1125
        %v1127 = vrot.slane %v516, 4
        %v1128 = vsel %vm747, 0.0, %v1127
        %v1130 = vunpack.c.l.s4 1983009808
        %v1131 = vunpack.c.0.s8 %v1130
        %v1132 = vperm.slane %v516, %v1131
        %v1134 = vunpack.c.l.s4 1983009808
        %v1135 = vunpack.c.0.s8 %v1134
        %v1136 = vperm.slane %v1128, %v1135
        %v1137 = vrot.slane %v1132, 4
        %v1138 = vsel %vm747, 0.0, %v1137
        %v1140 = vunpack.c.l.s4 1934713408
        %v1141 = vunpack.c.0.s8 %v1140
        %v1142 = vperm.slane %v1132, %v1141
        %v1144 = vunpack.c.l.s4 1934713408
        %v1145 = vunpack.c.0.s8 %v1144
        %v1146 = vperm.slane %v1138, %v1145
        %v1147 = vrot.slane %v1136, 4
        %v1148 = vsel %vm747, 0.0, %v1147
        %v1150 = vunpack.c.l.s4 1934713408
        %v1151 = vunpack.c.0.s8 %v1150
        %v1152 = vperm.slane %v1136, %v1151
        %v1154 = vunpack.c.l.s4 1934713408
        %v1155 = vunpack.c.0.s8 %v1154
        %v1156 = vperm.slane %v1148, %v1155
        %v1157 = vrot.slane %v1142, 4
        %v1158 = vsel %vm747, 0.0, %v1157
        %v1159 = vrot.slane %v1146, 4
        %v1160 = vsel %vm747, 0.0, %v1159
        %v1161 = vrot.slane %v1152, 4
        %v1162 = vsel %vm747, 0.0, %v1161
        %v1163 = vrot.slane %v1156, 4
        %v1164 = vsel %vm747, 0.0, %v1163
        %v1165 = vrot.slane %v517, 4
        %v1166 = vsel %vm747, 0.0, %v1165
        %v1168 = vunpack.c.l.s4 1983009808
        %v1169 = vunpack.c.0.s8 %v1168
        %v1170 = vperm.slane %v517, %v1169
        %v1172 = vunpack.c.l.s4 1983009808
        %v1173 = vunpack.c.0.s8 %v1172
        %v1174 = vperm.slane %v1166, %v1173
        %v1175 = vrot.slane %v1170, 4
        %v1176 = vsel %vm747, 0.0, %v1175
        %v1178 = vunpack.c.l.s4 1934713408
        %v1179 = vunpack.c.0.s8 %v1178
        %v1180 = vperm.slane %v1170, %v1179
        %v1182 = vunpack.c.l.s4 1934713408
        %v1183 = vunpack.c.0.s8 %v1182
        %v1184 = vperm.slane %v1176, %v1183
        %v1185 = vrot.slane %v1174, 4
        %v1186 = vsel %vm747, 0.0, %v1185
        %v1188 = vunpack.c.l.s4 1934713408
        %v1189 = vunpack.c.0.s8 %v1188
        %v1190 = vperm.slane %v1174, %v1189
        %v1192 = vunpack.c.l.s4 1934713408
        %v1193 = vunpack.c.0.s8 %v1192
        %v1194 = vperm.slane %v1186, %v1193
        %v1195 = vrot.slane %v1180, 4
        %v1196 = vsel %vm747, 0.0, %v1195
        %v1197 = vrot.slane %v1184, 4
        %v1198 = vsel %vm747, 0.0, %v1197
        %v1199 = vrot.slane %v1190, 4
        %v1200 = vsel %vm747, 0.0, %v1199
        %v1201 = vrot.slane %v1194, 4
        %v1202 = vsel %vm747, 0.0, %v1201
        %v1203 = vrot.slane %v518, 4
        %v1204 = vsel %vm747, 0.0, %v1203
        %v1206 = vunpack.c.l.s4 1983009808
        %v1207 = vunpack.c.0.s8 %v1206
        %v1208 = vperm.slane %v518, %v1207
        %v1210 = vunpack.c.l.s4 1983009808
        %v1211 = vunpack.c.0.s8 %v1210
        %v1212 = vperm.slane %v1204, %v1211
        %v1213 = vrot.slane %v1208, 4
        %v1214 = vsel %vm747, 0.0, %v1213
        %v1216 = vunpack.c.l.s4 1934713408
        %v1217 = vunpack.c.0.s8 %v1216
        %v1218 = vperm.slane %v1208, %v1217
        %v1220 = vunpack.c.l.s4 1934713408
        %v1221 = vunpack.c.0.s8 %v1220
        %v1222 = vperm.slane %v1214, %v1221
        %v1223 = vrot.slane %v1212, 4
        %v1224 = vsel %vm747, 0.0, %v1223
        %v1226 = vunpack.c.l.s4 1934713408
        %v1227 = vunpack.c.0.s8 %v1226
        %v1228 = vperm.slane %v1212, %v1227
        %v1230 = vunpack.c.l.s4 1934713408
        %v1231 = vunpack.c.0.s8 %v1230
        %v1232 = vperm.slane %v1224, %v1231
        %v1233 = vrot.slane %v1218, 4
        %v1234 = vsel %vm747, 0.0, %v1233
        %v1235 = vrot.slane %v1222, 4
        %v1236 = vsel %vm747, 0.0, %v1235
        %v1237 = vrot.slane %v1228, 4
        %v1238 = vsel %vm747, 0.0, %v1237
        %v1239 = vrot.slane %v1232, 4
        %v1240 = vsel %vm747, 0.0, %v1239
        %v1241 = vrot.slane %v519, 4
        %v1242 = vsel %vm747, 0.0, %v1241
        %v1244 = vunpack.c.l.s4 1983009808
        %v1245 = vunpack.c.0.s8 %v1244
        %v1246 = vperm.slane %v519, %v1245
        %v1248 = vunpack.c.l.s4 1983009808
        %v1249 = vunpack.c.0.s8 %v1248
        %v1250 = vperm.slane %v1242, %v1249
        %v1251 = vrot.slane %v1246, 4
        %v1252 = vsel %vm747, 0.0, %v1251
        %v1254 = vunpack.c.l.s4 1934713408
        %v1255 = vunpack.c.0.s8 %v1254
        %v1256 = vperm.slane %v1246, %v1255
        %v1258 = vunpack.c.l.s4 1934713408
        %v1259 = vunpack.c.0.s8 %v1258
        %v1260 = vperm.slane %v1252, %v1259
        %v1261 = vrot.slane %v1250, 4
        %v1262 = vsel %vm747, 0.0, %v1261
        %v1264 = vunpack.c.l.s4 1934713408
        %v1265 = vunpack.c.0.s8 %v1264
        %v1266 = vperm.slane %v1250, %v1265
        %v1268 = vunpack.c.l.s4 1934713408
        %v1269 = vunpack.c.0.s8 %v1268
        %v1270 = vperm.slane %v1262, %v1269
        %v1271 = vrot.slane %v1256, 4
        %v1272 = vsel %vm747, 0.0, %v1271
        %v1273 = vrot.slane %v1260, 4
        %v1274 = vsel %vm747, 0.0, %v1273
        %v1275 = vrot.slane %v1266, 4
        %v1276 = vsel %vm747, 0.0, %v1275
        %v1277 = vrot.slane %v1270, 4
        %v1278 = vsel %vm747, 0.0, %v1277
        %v1279 = vrot.slane %v520, 4
        %v1280 = vsel %vm747, 0.0, %v1279
        %v1282 = vunpack.c.l.s4 1983009808
        %v1283 = vunpack.c.0.s8 %v1282
        %v1284 = vperm.slane %v520, %v1283
        %v1286 = vunpack.c.l.s4 1983009808
        %v1287 = vunpack.c.0.s8 %v1286
        %v1288 = vperm.slane %v1280, %v1287
        %v1289 = vrot.slane %v1284, 4
        %v1290 = vsel %vm747, 0.0, %v1289
        %v1292 = vunpack.c.l.s4 1934713408
        %v1293 = vunpack.c.0.s8 %v1292
        %v1294 = vperm.slane %v1284, %v1293
        %v1296 = vunpack.c.l.s4 1934713408
        %v1297 = vunpack.c.0.s8 %v1296
        %v1298 = vperm.slane %v1290, %v1297
        %v1299 = vrot.slane %v1288, 4
        %v1300 = vsel %vm747, 0.0, %v1299
        %v1302 = vunpack.c.l.s4 1934713408
        %v1303 = vunpack.c.0.s8 %v1302
        %v1304 = vperm.slane %v1288, %v1303
        %v1306 = vunpack.c.l.s4 1934713408
        %v1307 = vunpack.c.0.s8 %v1306
        %v1308 = vperm.slane %v1300, %v1307
        %v1309 = vrot.slane %v1294, 4
        %v1310 = vsel %vm747, 0.0, %v1309
        %v1311 = vrot.slane %v1298, 4
        %v1312 = vsel %vm747, 0.0, %v1311
        %v1313 = vrot.slane %v1304, 4
        %v1314 = vsel %vm747, 0.0, %v1313
        %v1315 = vrot.slane %v1308, 4
        %v1316 = vsel %vm747, 0.0, %v1315
        %v1317 = vrot.slane %v521, 4
        %v1318 = vsel %vm747, 0.0, %v1317
        %v1320 = vunpack.c.l.s4 1983009808
        %v1321 = vunpack.c.0.s8 %v1320
        %v1322 = vperm.slane %v521, %v1321
        %v1324 = vunpack.c.l.s4 1983009808
        %v1325 = vunpack.c.0.s8 %v1324
        %v1326 = vperm.slane %v1318, %v1325
        %v1327 = vrot.slane %v1322, 4
        %v1328 = vsel %vm747, 0.0, %v1327
        %v1330 = vunpack.c.l.s4 1934713408
        %v1331 = vunpack.c.0.s8 %v1330
        %v1332 = vperm.slane %v1322, %v1331
        %v1334 = vunpack.c.l.s4 1934713408
        %v1335 = vunpack.c.0.s8 %v1334
        %v1336 = vperm.slane %v1328, %v1335
        %v1337 = vrot.slane %v1326, 4
        %v1338 = vsel %vm747, 0.0, %v1337
        %v1340 = vunpack.c.l.s4 1934713408
        %v1341 = vunpack.c.0.s8 %v1340
        %v1342 = vperm.slane %v1326, %v1341
        %v1344 = vunpack.c.l.s4 1934713408
        %v1345 = vunpack.c.0.s8 %v1344
        %v1346 = vperm.slane %v1338, %v1345
        %v1347 = vrot.slane %v1332, 4
        %v1348 = vsel %vm747, 0.0, %v1347
        %v1349 = vrot.slane %v1336, 4
        %v1350 = vsel %vm747, 0.0, %v1349
        %v1351 = vrot.slane %v1342, 4
        %v1352 = vsel %vm747, 0.0, %v1351
        %v1353 = vrot.slane %v1346, 4
        %v1354 = vsel %vm747, 0.0, %v1353
        %1363 = vrot.lane.b32.xlu0 %v778, 2
        %v1364 = vpop.permute.xlu0 %1363
        %1365 = vrot.lane.b32.xlu0 %v854, 2
        %v1366 = vpop.permute.xlu0 %1365
        %1367 = vrot.lane.b32.xlu0 %v930, 2
        %v1368 = vpop.permute.xlu0 %1367
        %1369 = vrot.lane.b32.xlu0 %v1006, 2
        %v1370 = vpop.permute.xlu0 %1369
        %1371 = vrot.lane.b32.xlu0 %v1082, 2
        %v1372 = vpop.permute.xlu0 %1371
        %1373 = vrot.lane.b32.xlu0 %v1158, 2
        %v1374 = vpop.permute.xlu0 %1373
        %1375 = vrot.lane.b32.xlu0 %v1234, 2
        %v1376 = vpop.permute.xlu0 %1375
        %1377 = vrot.lane.b32.xlu0 %v1310, 2
        %v1378 = vpop.permute.xlu0 %1377
        %1395 = vrot.lane.b32.xlu0 %v766, 4
        %v1396 = vpop.permute.xlu0 %1395
        %1397 = vrot.lane.b32.xlu0 %v842, 4
        %v1398 = vpop.permute.xlu0 %1397
        %1399 = vrot.lane.b32.xlu0 %v918, 4
        %v1400 = vpop.permute.xlu0 %1399
        %1401 = vrot.lane.b32.xlu0 %v994, 4
        %v1402 = vpop.permute.xlu0 %1401
        %1403 = vrot.lane.b32.xlu0 %v1070, 4
        %v1404 = vpop.permute.xlu0 %1403
        %1405 = vrot.lane.b32.xlu0 %v1146, 4
        %v1406 = vpop.permute.xlu0 %1405
        %1407 = vrot.lane.b32.xlu0 %v1222, 4
        %v1408 = vpop.permute.xlu0 %1407
        %1409 = vrot.lane.b32.xlu0 %v1298, 4
        %v1410 = vpop.permute.xlu0 %1409
        %1427 = vrot.lane.b32.xlu0 %v780, 6
        %v1428 = vpop.permute.xlu0 %1427
        %1429 = vrot.lane.b32.xlu0 %v856, 6
        %v1430 = vpop.permute.xlu0 %1429
        %1431 = vrot.lane.b32.xlu0 %v932, 6
        %v1432 = vpop.permute.xlu0 %1431
        %1433 = vrot.lane.b32.xlu0 %v1008, 6
        %v1434 = vpop.permute.xlu0 %1433
        %1435 = vrot.lane.b32.xlu0 %v1084, 6
        %v1436 = vpop.permute.xlu0 %1435
        %1437 = vrot.lane.b32.xlu0 %v1160, 6
        %v1438 = vpop.permute.xlu0 %1437
        %1439 = vrot.lane.b32.xlu0 %v1236, 6
        %v1440 = vpop.permute.xlu0 %1439
        %1441 = vrot.lane.b32.xlu0 %v1312, 6
        %v1442 = vpop.permute.xlu0 %1441
        %1459 = vrot.lane.b32.xlu0 %v772, 8
        %v1460 = vpop.permute.xlu0 %1459
        %1461 = vrot.lane.b32.xlu0 %v848, 8
        %v1462 = vpop.permute.xlu0 %1461
        %1463 = vrot.lane.b32.xlu0 %v924, 8
        %v1464 = vpop.permute.xlu0 %1463
        %1465 = vrot.lane.b32.xlu0 %v1000, 8
        %v1466 = vpop.permute.xlu0 %1465
        %1467 = vrot.lane.b32.xlu0 %v1076, 8
        %v1468 = vpop.permute.xlu0 %1467
        %1469 = vrot.lane.b32.xlu0 %v1152, 8
        %v1470 = vpop.permute.xlu0 %1469
        %1471 = vrot.lane.b32.xlu0 %v1228, 8
        %v1472 = vpop.permute.xlu0 %1471
        %1473 = vrot.lane.b32.xlu0 %v1304, 8
        %v1474 = vpop.permute.xlu0 %1473
        %1491 = vrot.lane.b32.xlu0 %v782, 10
        %v1492 = vpop.permute.xlu0 %1491
        %1493 = vrot.lane.b32.xlu0 %v858, 10
        %v1494 = vpop.permute.xlu0 %1493
        %1495 = vrot.lane.b32.xlu0 %v934, 10
        %v1496 = vpop.permute.xlu0 %1495
        %1497 = vrot.lane.b32.xlu0 %v1010, 10
        %v1498 = vpop.permute.xlu0 %1497
        %1499 = vrot.lane.b32.xlu0 %v1086, 10
        %v1500 = vpop.permute.xlu0 %1499
        %1501 = vrot.lane.b32.xlu0 %v1162, 10
        %v1502 = vpop.permute.xlu0 %1501
        %1503 = vrot.lane.b32.xlu0 %v1238, 10
        %v1504 = vpop.permute.xlu0 %1503
        %1505 = vrot.lane.b32.xlu0 %v1314, 10
        %v1506 = vpop.permute.xlu0 %1505
        %1523 = vrot.lane.b32.xlu0 %v776, 12
        %v1524 = vpop.permute.xlu0 %1523
        %1525 = vrot.lane.b32.xlu0 %v852, 12
        %v1526 = vpop.permute.xlu0 %1525
        %1527 = vrot.lane.b32.xlu0 %v928, 12
        %v1528 = vpop.permute.xlu0 %1527
        %1529 = vrot.lane.b32.xlu0 %v1004, 12
        %v1530 = vpop.permute.xlu0 %1529
        %1531 = vrot.lane.b32.xlu0 %v1080, 12
        %v1532 = vpop.permute.xlu0 %1531
        %1533 = vrot.lane.b32.xlu0 %v1156, 12
        %v1534 = vpop.permute.xlu0 %1533
        %1535 = vrot.lane.b32.xlu0 %v1232, 12
        %v1536 = vpop.permute.xlu0 %1535
        %1537 = vrot.lane.b32.xlu0 %v1308, 12
        %v1538 = vpop.permute.xlu0 %1537
        %1555 = vrot.lane.b32.xlu0 %v784, 14
        %v1556 = vpop.permute.xlu0 %1555
        %1557 = vrot.lane.b32.xlu0 %v860, 14
        %v1558 = vpop.permute.xlu0 %1557
        %1559 = vrot.lane.b32.xlu0 %v936, 14
        %v1560 = vpop.permute.xlu0 %1559
        %1561 = vrot.lane.b32.xlu0 %v1012, 14
        %v1562 = vpop.permute.xlu0 %1561
        %1563 = vrot.lane.b32.xlu0 %v1088, 14
        %v1564 = vpop.permute.xlu0 %1563
        %1565 = vrot.lane.b32.xlu0 %v1164, 14
        %v1566 = vpop.permute.xlu0 %1565
        %1567 = vrot.lane.b32.xlu0 %v1240, 14
        %v1568 = vpop.permute.xlu0 %1567
        %1569 = vrot.lane.b32.xlu0 %v1316, 14
        %v1570 = vpop.permute.xlu0 %1569
        %1587 = vrot.lane.b32.xlu0 %v800, 16
        %v1588 = vpop.permute.xlu0 %1587
        %1589 = vrot.lane.b32.xlu0 %v876, 16
        %v1590 = vpop.permute.xlu0 %1589
        %1591 = vrot.lane.b32.xlu0 %v952, 16
        %v1592 = vpop.permute.xlu0 %1591
        %1593 = vrot.lane.b32.xlu0 %v1028, 16
        %v1594 = vpop.permute.xlu0 %1593
        %1595 = vrot.lane.b32.xlu0 %v1104, 16
        %v1596 = vpop.permute.xlu0 %1595
        %1597 = vrot.lane.b32.xlu0 %v1180, 16
        %v1598 = vpop.permute.xlu0 %1597
        %1599 = vrot.lane.b32.xlu0 %v1256, 16
        %v1600 = vpop.permute.xlu0 %1599
        %1601 = vrot.lane.b32.xlu0 %v1332, 16
        %v1602 = vpop.permute.xlu0 %1601
        %1619 = vrot.lane.b32.xlu0 %v816, 18
        %v1620 = vpop.permute.xlu0 %1619
        %1621 = vrot.lane.b32.xlu0 %v892, 18
        %v1622 = vpop.permute.xlu0 %1621
        %1623 = vrot.lane.b32.xlu0 %v968, 18
        %v1624 = vpop.permute.xlu0 %1623
        %1625 = vrot.lane.b32.xlu0 %v1044, 18
        %v1626 = vpop.permute.xlu0 %1625
        %1627 = vrot.lane.b32.xlu0 %v1120, 18
        %v1628 = vpop.permute.xlu0 %1627
        %1629 = vrot.lane.b32.xlu0 %v1196, 18
        %v1630 = vpop.permute.xlu0 %1629
        %1631 = vrot.lane.b32.xlu0 %v1272, 18
        %v1632 = vpop.permute.xlu0 %1631
        %1633 = vrot.lane.b32.xlu0 %v1348, 18
        %v1634 = vpop.permute.xlu0 %1633
        %1651 = vrot.lane.b32.xlu0 %v804, 20
        %v1652 = vpop.permute.xlu0 %1651
        %1653 = vrot.lane.b32.xlu0 %v880, 20
        %v1654 = vpop.permute.xlu0 %1653
        %1655 = vrot.lane.b32.xlu0 %v956, 20
        %v1656 = vpop.permute.xlu0 %1655
        %1657 = vrot.lane.b32.xlu0 %v1032, 20
        %v1658 = vpop.permute.xlu0 %1657
        %1659 = vrot.lane.b32.xlu0 %v1108, 20
        %v1660 = vpop.permute.xlu0 %1659
        %1661 = vrot.lane.b32.xlu0 %v1184, 20
        %v1662 = vpop.permute.xlu0 %1661
        %1663 = vrot.lane.b32.xlu0 %v1260, 20
        %v1664 = vpop.permute.xlu0 %1663
        %1665 = vrot.lane.b32.xlu0 %v1336, 20
        %v1666 = vpop.permute.xlu0 %1665
        %1683 = vrot.lane.b32.xlu0 %v818, 22
        %v1684 = vpop.permute.xlu0 %1683
        %1685 = vrot.lane.b32.xlu0 %v894, 22
        %v1686 = vpop.permute.xlu0 %1685
        %1687 = vrot.lane.b32.xlu0 %v970, 22
        %v1688 = vpop.permute.xlu0 %1687
        %1689 = vrot.lane.b32.xlu0 %v1046, 22
        %v1690 = vpop.permute.xlu0 %1689
        %1691 = vrot.lane.b32.xlu0 %v1122, 22
        %v1692 = vpop.permute.xlu0 %1691
        %1693 = vrot.lane.b32.xlu0 %v1198, 22
        %v1694 = vpop.permute.xlu0 %1693
        %1695 = vrot.lane.b32.xlu0 %v1274, 22
        %v1696 = vpop.permute.xlu0 %1695
        %1697 = vrot.lane.b32.xlu0 %v1350, 22
        %v1698 = vpop.permute.xlu0 %1697
        %1715 = vrot.lane.b32.xlu0 %v810, 24
        %v1716 = vpop.permute.xlu0 %1715
        %1717 = vrot.lane.b32.xlu0 %v886, 24
        %v1718 = vpop.permute.xlu0 %1717
        %1719 = vrot.lane.b32.xlu0 %v962, 24
        %v1720 = vpop.permute.xlu0 %1719
        %1721 = vrot.lane.b32.xlu0 %v1038, 24
        %v1722 = vpop.permute.xlu0 %1721
        %1723 = vrot.lane.b32.xlu0 %v1114, 24
        %v1724 = vpop.permute.xlu0 %1723
        %1725 = vrot.lane.b32.xlu0 %v1190, 24
        %v1726 = vpop.permute.xlu0 %1725
        %1727 = vrot.lane.b32.xlu0 %v1266, 24
        %v1728 = vpop.permute.xlu0 %1727
        %1729 = vrot.lane.b32.xlu0 %v1342, 24
        %v1730 = vpop.permute.xlu0 %1729
        %1747 = vrot.lane.b32.xlu0 %v820, 26
        %v1748 = vpop.permute.xlu0 %1747
        %1749 = vrot.lane.b32.xlu0 %v896, 26
        %v1750 = vpop.permute.xlu0 %1749
        %1751 = vrot.lane.b32.xlu0 %v972, 26
        %v1752 = vpop.permute.xlu0 %1751
        %1753 = vrot.lane.b32.xlu0 %v1048, 26
        %v1754 = vpop.permute.xlu0 %1753
        %1755 = vrot.lane.b32.xlu0 %v1124, 26
        %v1756 = vpop.permute.xlu0 %1755
        %1757 = vrot.lane.b32.xlu0 %v1200, 26
        %v1758 = vpop.permute.xlu0 %1757
        %1759 = vrot.lane.b32.xlu0 %v1276, 26
        %v1760 = vpop.permute.xlu0 %1759
        %1761 = vrot.lane.b32.xlu0 %v1352, 26
        %v1762 = vpop.permute.xlu0 %1761
        %1779 = vrot.lane.b32.xlu0 %v814, 28
        %v1780 = vpop.permute.xlu0 %1779
        %1781 = vrot.lane.b32.xlu0 %v890, 28
        %v1782 = vpop.permute.xlu0 %1781
        %1783 = vrot.lane.b32.xlu0 %v966, 28
        %v1784 = vpop.permute.xlu0 %1783
        %1785 = vrot.lane.b32.xlu0 %v1042, 28
        %v1786 = vpop.permute.xlu0 %1785
        %1787 = vrot.lane.b32.xlu0 %v1118, 28
        %v1788 = vpop.permute.xlu0 %1787
        %1789 = vrot.lane.b32.xlu0 %v1194, 28
        %v1790 = vpop.permute.xlu0 %1789
        %1791 = vrot.lane.b32.xlu0 %v1270, 28
        %v1792 = vpop.permute.xlu0 %1791
        %1793 = vrot.lane.b32.xlu0 %v1346, 28
        %v1794 = vpop.permute.xlu0 %1793
        %1811 = vrot.lane.b32.xlu0 %v822, 30
        %v1812 = vpop.permute.xlu0 %1811
        %1813 = vrot.lane.b32.xlu0 %v898, 30
        %v1814 = vpop.permute.xlu0 %1813
        %1815 = vrot.lane.b32.xlu0 %v974, 30
        %v1816 = vpop.permute.xlu0 %1815
        %1817 = vrot.lane.b32.xlu0 %v1050, 30
        %v1818 = vpop.permute.xlu0 %1817
        %1819 = vrot.lane.b32.xlu0 %v1126, 30
        %v1820 = vpop.permute.xlu0 %1819
        %1821 = vrot.lane.b32.xlu0 %v1202, 30
        %v1822 = vpop.permute.xlu0 %1821
        %1823 = vrot.lane.b32.xlu0 %v1278, 30
        %v1824 = vpop.permute.xlu0 %1823
        %1825 = vrot.lane.b32.xlu0 %v1354, 30
        %v1826 = vpop.permute.xlu0 %1825
        %vm1835 = vcmask 15360
        %v1836 = vsel %vm1835, %v762, %v1364
        %v1837 = vsel %vm1835, %v838, %v1366
        %v1838 = vsel %vm1835, %v914, %v1368
        %v1839 = vsel %vm1835, %v990, %v1370
        %v1840 = vsel %vm1835, %v1066, %v1372
        %v1841 = vsel %vm1835, %v1142, %v1374
        %v1842 = vsel %vm1835, %v1218, %v1376
        %v1843 = vsel %vm1835, %v1294, %v1378
        %vm1844 = vcmask 31744
        %v1845 = vsel %vm1844, %v1836, %v1396
        %v1846 = vsel %vm1844, %v1837, %v1398
        %v1847 = vsel %vm1844, %v1838, %v1400
        %v1848 = vsel %vm1844, %v1839, %v1402
        %v1849 = vsel %vm1844, %v1840, %v1404
        %v1850 = vsel %vm1844, %v1841, %v1406
        %v1851 = vsel %vm1844, %v1842, %v1408
        %v1852 = vsel %vm1844, %v1843, %v1410
        %vm1853 = vcmask 48128
        %v1854 = vsel %vm1853, %v1845, %v1428
        %v1855 = vsel %vm1853, %v1846, %v1430
        %v1856 = vsel %vm1853, %v1847, %v1432
        %v1857 = vsel %vm1853, %v1848, %v1434
        %v1858 = vsel %vm1853, %v1849, %v1436
        %v1859 = vsel %vm1853, %v1850, %v1438
        %v1860 = vsel %vm1853, %v1851, %v1440
        %v1861 = vsel %vm1853, %v1852, %v1442
        %vm1862 = vcmask 64512
        %v1863 = vsel %vm1862, %v1854, %v1460
        %v1864 = vsel %vm1862, %v1855, %v1462
        %v1865 = vsel %vm1862, %v1856, %v1464
        %v1866 = vsel %vm1862, %v1857, %v1466
        %v1867 = vsel %vm1862, %v1858, %v1468
        %v1868 = vsel %vm1862, %v1859, %v1470
        %v1869 = vsel %vm1862, %v1860, %v1472
        %v1870 = vsel %vm1862, %v1861, %v1474
        %vm1871 = vcmask 80896
        %v1872 = vsel %vm1871, %v1863, %v1492
        %v1873 = vsel %vm1871, %v1864, %v1494
        %v1874 = vsel %vm1871, %v1865, %v1496
        %v1875 = vsel %vm1871, %v1866, %v1498
        %v1876 = vsel %vm1871, %v1867, %v1500
        %v1877 = vsel %vm1871, %v1868, %v1502
        %v1878 = vsel %vm1871, %v1869, %v1504
        %v1879 = vsel %vm1871, %v1870, %v1506
        %vm1880 = vcmask 97280
        %v1881 = vsel %vm1880, %v1872, %v1524
        %v1882 = vsel %vm1880, %v1873, %v1526
        %v1883 = vsel %vm1880, %v1874, %v1528
        %v1884 = vsel %vm1880, %v1875, %v1530
        %v1885 = vsel %vm1880, %v1876, %v1532
        %v1886 = vsel %vm1880, %v1877, %v1534
        %v1887 = vsel %vm1880, %v1878, %v1536
        %v1888 = vsel %vm1880, %v1879, %v1538
        %vm1889 = vcmask 113664
        %v1890 = vsel %vm1889, %v1881, %v1556
        %v1891 = vsel %vm1889, %v1882, %v1558
        %v1892 = vsel %vm1889, %v1883, %v1560
        %v1893 = vsel %vm1889, %v1884, %v1562
        %v1894 = vsel %vm1889, %v1885, %v1564
        %v1895 = vsel %vm1889, %v1886, %v1566
        %v1896 = vsel %vm1889, %v1887, %v1568
        %v1897 = vsel %vm1889, %v1888, %v1570
        %vm1898 = vcmask 130048
        %v1899 = vsel %vm1898, %v1890, %v1588
        %v1900 = vsel %vm1898, %v1891, %v1590
        %v1901 = vsel %vm1898, %v1892, %v1592
        %v1902 = vsel %vm1898, %v1893, %v1594
        %v1903 = vsel %vm1898, %v1894, %v1596
        %v1904 = vsel %vm1898, %v1895, %v1598
        %v1905 = vsel %vm1898, %v1896, %v1600
        %v1906 = vsel %vm1898, %v1897, %v1602
        %vm1907 = vcmask 146432
        %v1908 = vsel %vm1907, %v1899, %v1620
        %v1909 = vsel %vm1907, %v1900, %v1622
        %v1910 = vsel %vm1907, %v1901, %v1624
        %v1911 = vsel %vm1907, %v1902, %v1626
        %v1912 = vsel %vm1907, %v1903, %v1628
        %v1913 = vsel %vm1907, %v1904, %v1630
        %v1914 = vsel %vm1907, %v1905, %v1632
        %v1915 = vsel %vm1907, %v1906, %v1634
        %vm1916 = vcmask 162816
        %v1917 = vsel %vm1916, %v1908, %v1652
        %v1918 = vsel %vm1916, %v1909, %v1654
        %v1919 = vsel %vm1916, %v1910, %v1656
        %v1920 = vsel %vm1916, %v1911, %v1658
        %v1921 = vsel %vm1916, %v1912, %v1660
        %v1922 = vsel %vm1916, %v1913, %v1662
        %v1923 = vsel %vm1916, %v1914, %v1664
        %v1924 = vsel %vm1916, %v1915, %v1666
        %vm1925 = vcmask 179200
        %v1926 = vsel %vm1925, %v1917, %v1684
        %v1927 = vsel %vm1925, %v1918, %v1686
        %v1928 = vsel %vm1925, %v1919, %v1688
        %v1929 = vsel %vm1925, %v1920, %v1690
        %v1930 = vsel %vm1925, %v1921, %v1692
        %v1931 = vsel %vm1925, %v1922, %v1694
        %v1932 = vsel %vm1925, %v1923, %v1696
        %v1933 = vsel %vm1925, %v1924, %v1698
        %vm1934 = vcmask 195584
        %v1935 = vsel %vm1934, %v1926, %v1716
        %v1936 = vsel %vm1934, %v1927, %v1718
        %v1937 = vsel %vm1934, %v1928, %v1720
        %v1938 = vsel %vm1934, %v1929, %v1722
        %v1939 = vsel %vm1934, %v1930, %v1724
        %v1940 = vsel %vm1934, %v1931, %v1726
        %v1941 = vsel %vm1934, %v1932, %v1728
        %v1942 = vsel %vm1934, %v1933, %v1730
        %vm1943 = vcmask 211968
        %v1944 = vsel %vm1943, %v1935, %v1748
        %v1945 = vsel %vm1943, %v1936, %v1750
        %v1946 = vsel %vm1943, %v1937, %v1752
        %v1947 = vsel %vm1943, %v1938, %v1754
        %v1948 = vsel %vm1943, %v1939, %v1756
        %v1949 = vsel %vm1943, %v1940, %v1758
        %v1950 = vsel %vm1943, %v1941, %v1760
        %v1951 = vsel %vm1943, %v1942, %v1762
        %vm1952 = vcmask 228352
        %v1953 = vsel %vm1952, %v1944, %v1780
        %v1954 = vsel %vm1952, %v1945, %v1782
        %v1955 = vsel %vm1952, %v1946, %v1784
        %v1956 = vsel %vm1952, %v1947, %v1786
        %v1957 = vsel %vm1952, %v1948, %v1788
        %v1958 = vsel %vm1952, %v1949, %v1790
        %v1959 = vsel %vm1952, %v1950, %v1792
        %v1960 = vsel %vm1952, %v1951, %v1794
        %vm1961 = vcmask 244736
        %v1962 = vsel %vm1961, %v1953, %v1812
        %v1963 = vsel %vm1961, %v1954, %v1814
        %v1964 = vsel %vm1961, %v1955, %v1816
        %v1965 = vsel %vm1961, %v1956, %v1818
        %v1966 = vsel %vm1961, %v1957, %v1820
        %v1967 = vsel %vm1961, %v1958, %v1822
        %v1968 = vsel %vm1961, %v1959, %v1824
        %v1969 = vsel %vm1961, %v1960, %v1826
        %v1970 = vrot.slane %v730, 4
        %v1971 = vsel %vm747, 0.0, %v1970
        %v1973 = vunpack.c.l.s4 1983009808
        %v1974 = vunpack.c.0.s8 %v1973
        %v1975 = vperm.slane %v730, %v1974
        %v1977 = vunpack.c.l.s4 1983009808
        %v1978 = vunpack.c.0.s8 %v1977
        %v1979 = vperm.slane %v1971, %v1978
        %v1980 = vrot.slane %v1975, 4
        %v1981 = vsel %vm747, 0.0, %v1980
        %v1983 = vunpack.c.l.s4 1934713408
        %v1984 = vunpack.c.0.s8 %v1983
        %v1985 = vperm.slane %v1975, %v1984
        %v1987 = vunpack.c.l.s4 1934713408
        %v1988 = vunpack.c.0.s8 %v1987
        %v1989 = vperm.slane %v1981, %v1988
        %v1990 = vrot.slane %v1979, 4
        %v1991 = vsel %vm747, 0.0, %v1990
        %v1993 = vunpack.c.l.s4 1934713408
        %v1994 = vunpack.c.0.s8 %v1993
        %v1995 = vperm.slane %v1979, %v1994
        %v1997 = vunpack.c.l.s4 1934713408
        %v1998 = vunpack.c.0.s8 %v1997
        %v1999 = vperm.slane %v1991, %v1998
        %v2000 = vrot.slane %v1985, 4
        %v2001 = vsel %vm747, 0.0, %v2000
        %v2002 = vrot.slane %v1989, 4
        %v2003 = vsel %vm747, 0.0, %v2002
        %v2004 = vrot.slane %v1995, 4
        %v2005 = vsel %vm747, 0.0, %v2004
        %v2006 = vrot.slane %v1999, 4
        %v2007 = vsel %vm747, 0.0, %v2006
        %v2008 = vrot.slane %v731, 4
        %v2009 = vsel %vm747, 0.0, %v2008
        %v2011 = vunpack.c.l.s4 1983009808
        %v2012 = vunpack.c.0.s8 %v2011
        %v2013 = vperm.slane %v731, %v2012
        %v2015 = vunpack.c.l.s4 1983009808
        %v2016 = vunpack.c.0.s8 %v2015
        %v2017 = vperm.slane %v2009, %v2016
        %v2018 = vrot.slane %v2013, 4
        %v2019 = vsel %vm747, 0.0, %v2018
        %v2021 = vunpack.c.l.s4 1934713408
        %v2022 = vunpack.c.0.s8 %v2021
        %v2023 = vperm.slane %v2013, %v2022
        %v2025 = vunpack.c.l.s4 1934713408
        %v2026 = vunpack.c.0.s8 %v2025
        %v2027 = vperm.slane %v2019, %v2026
        %v2028 = vrot.slane %v2017, 4
        %v2029 = vsel %vm747, 0.0, %v2028
        %v2031 = vunpack.c.l.s4 1934713408
        %v2032 = vunpack.c.0.s8 %v2031
        %v2033 = vperm.slane %v2017, %v2032
        %v2035 = vunpack.c.l.s4 1934713408
        %v2036 = vunpack.c.0.s8 %v2035
        %v2037 = vperm.slane %v2029, %v2036
        %v2038 = vrot.slane %v2023, 4
        %v2039 = vsel %vm747, 0.0, %v2038
        %v2040 = vrot.slane %v2027, 4
        %v2041 = vsel %vm747, 0.0, %v2040
        %v2042 = vrot.slane %v2033, 4
        %v2043 = vsel %vm747, 0.0, %v2042
        %v2044 = vrot.slane %v2037, 4
        %v2045 = vsel %vm747, 0.0, %v2044
        %v2046 = vrot.slane %v732, 4
        %v2047 = vsel %vm747, 0.0, %v2046
        %v2049 = vunpack.c.l.s4 1983009808
        %v2050 = vunpack.c.0.s8 %v2049
        %v2051 = vperm.slane %v732, %v2050
        %v2053 = vunpack.c.l.s4 1983009808
        %v2054 = vunpack.c.0.s8 %v2053
        %v2055 = vperm.slane %v2047, %v2054
        %v2056 = vrot.slane %v2051, 4
        %v2057 = vsel %vm747, 0.0, %v2056
        %v2059 = vunpack.c.l.s4 1934713408
        %v2060 = vunpack.c.0.s8 %v2059
        %v2061 = vperm.slane %v2051, %v2060
        %v2063 = vunpack.c.l.s4 1934713408
        %v2064 = vunpack.c.0.s8 %v2063
        %v2065 = vperm.slane %v2057, %v2064
        %v2066 = vrot.slane %v2055, 4
        %v2067 = vsel %vm747, 0.0, %v2066
        %v2069 = vunpack.c.l.s4 1934713408
        %v2070 = vunpack.c.0.s8 %v2069
        %v2071 = vperm.slane %v2055, %v2070
        %v2073 = vunpack.c.l.s4 1934713408
        %v2074 = vunpack.c.0.s8 %v2073
        %v2075 = vperm.slane %v2067, %v2074
        %v2076 = vrot.slane %v2061, 4
        %v2077 = vsel %vm747, 0.0, %v2076
        %v2078 = vrot.slane %v2065, 4
        %v2079 = vsel %vm747, 0.0, %v2078
        %v2080 = vrot.slane %v2071, 4
        %v2081 = vsel %vm747, 0.0, %v2080
        %v2082 = vrot.slane %v2075, 4
        %v2083 = vsel %vm747, 0.0, %v2082
        %v2084 = vrot.slane %v733, 4
        %v2085 = vsel %vm747, 0.0, %v2084
        %v2087 = vunpack.c.l.s4 1983009808
        %v2088 = vunpack.c.0.s8 %v2087
        %v2089 = vperm.slane %v733, %v2088
        %v2091 = vunpack.c.l.s4 1983009808
        %v2092 = vunpack.c.0.s8 %v2091
        %v2093 = vperm.slane %v2085, %v2092
        %v2094 = vrot.slane %v2089, 4
        %v2095 = vsel %vm747, 0.0, %v2094
        %v2097 = vunpack.c.l.s4 1934713408
        %v2098 = vunpack.c.0.s8 %v2097
        %v2099 = vperm.slane %v2089, %v2098
        %v2101 = vunpack.c.l.s4 1934713408
        %v2102 = vunpack.c.0.s8 %v2101
        %v2103 = vperm.slane %v2095, %v2102
        %v2104 = vrot.slane %v2093, 4
        %v2105 = vsel %vm747, 0.0, %v2104
        %v2107 = vunpack.c.l.s4 1934713408
        %v2108 = vunpack.c.0.s8 %v2107
        %v2109 = vperm.slane %v2093, %v2108
        %v2111 = vunpack.c.l.s4 1934713408
        %v2112 = vunpack.c.0.s8 %v2111
        %v2113 = vperm.slane %v2105, %v2112
        %v2114 = vrot.slane %v2099, 4
        %v2115 = vsel %vm747, 0.0, %v2114
        %v2116 = vrot.slane %v2103, 4
        %v2117 = vsel %vm747, 0.0, %v2116
        %v2118 = vrot.slane %v2109, 4
        %v2119 = vsel %vm747, 0.0, %v2118
        %v2120 = vrot.slane %v2113, 4
        %v2121 = vsel %vm747, 0.0, %v2120
        %v2122 = vrot.slane %v734, 4
        %v2123 = vsel %vm747, 0.0, %v2122
        %v2125 = vunpack.c.l.s4 1983009808
        %v2126 = vunpack.c.0.s8 %v2125
        %v2127 = vperm.slane %v734, %v2126
        %v2129 = vunpack.c.l.s4 1983009808
        %v2130 = vunpack.c.0.s8 %v2129
        %v2131 = vperm.slane %v2123, %v2130
        %v2132 = vrot.slane %v2127, 4
        %v2133 = vsel %vm747, 0.0, %v2132
        %v2135 = vunpack.c.l.s4 1934713408
        %v2136 = vunpack.c.0.s8 %v2135
        %v2137 = vperm.slane %v2127, %v2136
        %v2139 = vunpack.c.l.s4 1934713408
        %v2140 = vunpack.c.0.s8 %v2139
        %v2141 = vperm.slane %v2133, %v2140
        %v2142 = vrot.slane %v2131, 4
        %v2143 = vsel %vm747, 0.0, %v2142
        %v2145 = vunpack.c.l.s4 1934713408
        %v2146 = vunpack.c.0.s8 %v2145
        %v2147 = vperm.slane %v2131, %v2146
        %v2149 = vunpack.c.l.s4 1934713408
        %v2150 = vunpack.c.0.s8 %v2149
        %v2151 = vperm.slane %v2143, %v2150
        %v2152 = vrot.slane %v2137, 4
        %v2153 = vsel %vm747, 0.0, %v2152
        %v2154 = vrot.slane %v2141, 4
        %v2155 = vsel %vm747, 0.0, %v2154
        %v2156 = vrot.slane %v2147, 4
        %v2157 = vsel %vm747, 0.0, %v2156
        %v2158 = vrot.slane %v2151, 4
        %v2159 = vsel %vm747, 0.0, %v2158
        %v2160 = vrot.slane %v735, 4
        %v2161 = vsel %vm747, 0.0, %v2160
        %v2163 = vunpack.c.l.s4 1983009808
        %v2164 = vunpack.c.0.s8 %v2163
        %v2165 = vperm.slane %v735, %v2164
        %v2167 = vunpack.c.l.s4 1983009808
        %v2168 = vunpack.c.0.s8 %v2167
        %v2169 = vperm.slane %v2161, %v2168
        %v2170 = vrot.slane %v2165, 4
        %v2171 = vsel %vm747, 0.0, %v2170
        %v2173 = vunpack.c.l.s4 1934713408
        %v2174 = vunpack.c.0.s8 %v2173
        %v2175 = vperm.slane %v2165, %v2174
        %v2177 = vunpack.c.l.s4 1934713408
        %v2178 = vunpack.c.0.s8 %v2177
        %v2179 = vperm.slane %v2171, %v2178
        %v2180 = vrot.slane %v2169, 4
        %v2181 = vsel %vm747, 0.0, %v2180
        %v2183 = vunpack.c.l.s4 1934713408
        %v2184 = vunpack.c.0.s8 %v2183
        %v2185 = vperm.slane %v2169, %v2184
        %v2187 = vunpack.c.l.s4 1934713408
        %v2188 = vunpack.c.0.s8 %v2187
        %v2189 = vperm.slane %v2181, %v2188
        %v2190 = vrot.slane %v2175, 4
        %v2191 = vsel %vm747, 0.0, %v2190
        %v2192 = vrot.slane %v2179, 4
        %v2193 = vsel %vm747, 0.0, %v2192
        %v2194 = vrot.slane %v2185, 4
        %v2195 = vsel %vm747, 0.0, %v2194
        %v2196 = vrot.slane %v2189, 4
        %v2197 = vsel %vm747, 0.0, %v2196
        %v2198 = vrot.slane %v736, 4
        %v2199 = vsel %vm747, 0.0, %v2198
        %v2201 = vunpack.c.l.s4 1983009808
        %v2202 = vunpack.c.0.s8 %v2201
        %v2203 = vperm.slane %v736, %v2202
        %v2205 = vunpack.c.l.s4 1983009808
        %v2206 = vunpack.c.0.s8 %v2205
        %v2207 = vperm.slane %v2199, %v2206
        %v2208 = vrot.slane %v2203, 4
        %v2209 = vsel %vm747, 0.0, %v2208
        %v2211 = vunpack.c.l.s4 1934713408
        %v2212 = vunpack.c.0.s8 %v2211
        %v2213 = vperm.slane %v2203, %v2212
        %v2215 = vunpack.c.l.s4 1934713408
        %v2216 = vunpack.c.0.s8 %v2215
        %v2217 = vperm.slane %v2209, %v2216
        %v2218 = vrot.slane %v2207, 4
        %v2219 = vsel %vm747, 0.0, %v2218
        %v2221 = vunpack.c.l.s4 1934713408
        %v2222 = vunpack.c.0.s8 %v2221
        %v2223 = vperm.slane %v2207, %v2222
        %v2225 = vunpack.c.l.s4 1934713408
        %v2226 = vunpack.c.0.s8 %v2225
        %v2227 = vperm.slane %v2219, %v2226
        %v2228 = vrot.slane %v2213, 4
        %v2229 = vsel %vm747, 0.0, %v2228
        %v2230 = vrot.slane %v2217, 4
        %v2231 = vsel %vm747, 0.0, %v2230
        %v2232 = vrot.slane %v2223, 4
        %v2233 = vsel %vm747, 0.0, %v2232
        %v2234 = vrot.slane %v2227, 4
        %v2235 = vsel %vm747, 0.0, %v2234
        %v2236 = vrot.slane %v737, 4
        %v2237 = vsel %vm747, 0.0, %v2236
        %v2239 = vunpack.c.l.s4 1983009808
        %v2240 = vunpack.c.0.s8 %v2239
        %v2241 = vperm.slane %v737, %v2240
        %v2243 = vunpack.c.l.s4 1983009808
        %v2244 = vunpack.c.0.s8 %v2243
        %v2245 = vperm.slane %v2237, %v2244
        %v2246 = vrot.slane %v2241, 4
        %v2247 = vsel %vm747, 0.0, %v2246
        %v2249 = vunpack.c.l.s4 1934713408
        %v2250 = vunpack.c.0.s8 %v2249
        %v2251 = vperm.slane %v2241, %v2250
        %v2253 = vunpack.c.l.s4 1934713408
        %v2254 = vunpack.c.0.s8 %v2253
        %v2255 = vperm.slane %v2247, %v2254
        %v2256 = vrot.slane %v2245, 4
        %v2257 = vsel %vm747, 0.0, %v2256
        %v2259 = vunpack.c.l.s4 1934713408
        %v2260 = vunpack.c.0.s8 %v2259
        %v2261 = vperm.slane %v2245, %v2260
        %v2263 = vunpack.c.l.s4 1934713408
        %v2264 = vunpack.c.0.s8 %v2263
        %v2265 = vperm.slane %v2257, %v2264
        %v2266 = vrot.slane %v2251, 4
        %v2267 = vsel %vm747, 0.0, %v2266
        %v2268 = vrot.slane %v2255, 4
        %v2269 = vsel %vm747, 0.0, %v2268
        %v2270 = vrot.slane %v2261, 4
        %v2271 = vsel %vm747, 0.0, %v2270
        %v2272 = vrot.slane %v2265, 4
        %v2273 = vsel %vm747, 0.0, %v2272
        %v2274 = vrot.slane %v738, 4
        %v2275 = vsel %vm747, 0.0, %v2274
        %v2277 = vunpack.c.l.s4 1983009808
        %v2278 = vunpack.c.0.s8 %v2277
        %v2279 = vperm.slane %v738, %v2278
        %v2281 = vunpack.c.l.s4 1983009808
        %v2282 = vunpack.c.0.s8 %v2281
        %v2283 = vperm.slane %v2275, %v2282
        %v2284 = vrot.slane %v2279, 4
        %v2285 = vsel %vm747, 0.0, %v2284
        %v2287 = vunpack.c.l.s4 1934713408
        %v2288 = vunpack.c.0.s8 %v2287
        %v2289 = vperm.slane %v2279, %v2288
        %v2291 = vunpack.c.l.s4 1934713408
        %v2292 = vunpack.c.0.s8 %v2291
        %v2293 = vperm.slane %v2285, %v2292
        %v2294 = vrot.slane %v2283, 4
        %v2295 = vsel %vm747, 0.0, %v2294
        %v2297 = vunpack.c.l.s4 1934713408
        %v2298 = vunpack.c.0.s8 %v2297
        %v2299 = vperm.slane %v2283, %v2298
        %v2301 = vunpack.c.l.s4 1934713408
        %v2302 = vunpack.c.0.s8 %v2301
        %v2303 = vperm.slane %v2295, %v2302
        %v2304 = vrot.slane %v2289, 4
        %v2305 = vsel %vm747, 0.0, %v2304
        %v2306 = vrot.slane %v2293, 4
        %v2307 = vsel %vm747, 0.0, %v2306
        %v2308 = vrot.slane %v2299, 4
        %v2309 = vsel %vm747, 0.0, %v2308
        %v2310 = vrot.slane %v2303, 4
        %v2311 = vsel %vm747, 0.0, %v2310
        %v2312 = vrot.slane %v739, 4
        %v2313 = vsel %vm747, 0.0, %v2312
        %v2315 = vunpack.c.l.s4 1983009808
        %v2316 = vunpack.c.0.s8 %v2315
        %v2317 = vperm.slane %v739, %v2316
        %v2319 = vunpack.c.l.s4 1983009808
        %v2320 = vunpack.c.0.s8 %v2319
        %v2321 = vperm.slane %v2313, %v2320
        %v2322 = vrot.slane %v2317, 4
        %v2323 = vsel %vm747, 0.0, %v2322
        %v2325 = vunpack.c.l.s4 1934713408
        %v2326 = vunpack.c.0.s8 %v2325
        %v2327 = vperm.slane %v2317, %v2326
        %v2329 = vunpack.c.l.s4 1934713408
        %v2330 = vunpack.c.0.s8 %v2329
        %v2331 = vperm.slane %v2323, %v2330
        %v2332 = vrot.slane %v2321, 4
        %v2333 = vsel %vm747, 0.0, %v2332
        %v2335 = vunpack.c.l.s4 1934713408
        %v2336 = vunpack.c.0.s8 %v2335
        %v2337 = vperm.slane %v2321, %v2336
        %v2339 = vunpack.c.l.s4 1934713408
        %v2340 = vunpack.c.0.s8 %v2339
        %v2341 = vperm.slane %v2333, %v2340
        %v2342 = vrot.slane %v2327, 4
        %v2343 = vsel %vm747, 0.0, %v2342
        %v2344 = vrot.slane %v2331, 4
        %v2345 = vsel %vm747, 0.0, %v2344
        %v2346 = vrot.slane %v2337, 4
        %v2347 = vsel %vm747, 0.0, %v2346
        %v2348 = vrot.slane %v2341, 4
        %v2349 = vsel %vm747, 0.0, %v2348
        %v2350 = vrot.slane %v740, 4
        %v2351 = vsel %vm747, 0.0, %v2350
        %v2353 = vunpack.c.l.s4 1983009808
        %v2354 = vunpack.c.0.s8 %v2353
        %v2355 = vperm.slane %v740, %v2354
        %v2357 = vunpack.c.l.s4 1983009808
        %v2358 = vunpack.c.0.s8 %v2357
        %v2359 = vperm.slane %v2351, %v2358
        %v2360 = vrot.slane %v2355, 4
        %v2361 = vsel %vm747, 0.0, %v2360
        %v2363 = vunpack.c.l.s4 1934713408
        %v2364 = vunpack.c.0.s8 %v2363
        %v2365 = vperm.slane %v2355, %v2364
        %v2367 = vunpack.c.l.s4 1934713408
        %v2368 = vunpack.c.0.s8 %v2367
        %v2369 = vperm.slane %v2361, %v2368
        %v2370 = vrot.slane %v2359, 4
        %v2371 = vsel %vm747, 0.0, %v2370
        %v2373 = vunpack.c.l.s4 1934713408
        %v2374 = vunpack.c.0.s8 %v2373
        %v2375 = vperm.slane %v2359, %v2374
        %v2377 = vunpack.c.l.s4 1934713408
        %v2378 = vunpack.c.0.s8 %v2377
        %v2379 = vperm.slane %v2371, %v2378
        %v2380 = vrot.slane %v2365, 4
        %v2381 = vsel %vm747, 0.0, %v2380
        %v2382 = vrot.slane %v2369, 4
        %v2383 = vsel %vm747, 0.0, %v2382
        %v2384 = vrot.slane %v2375, 4
        %v2385 = vsel %vm747, 0.0, %v2384
        %v2386 = vrot.slane %v2379, 4
        %v2387 = vsel %vm747, 0.0, %v2386
        %v2388 = vrot.slane %v741, 4
        %v2389 = vsel %vm747, 0.0, %v2388
        %v2391 = vunpack.c.l.s4 1983009808
        %v2392 = vunpack.c.0.s8 %v2391
        %v2393 = vperm.slane %v741, %v2392
        %v2395 = vunpack.c.l.s4 1983009808
        %v2396 = vunpack.c.0.s8 %v2395
        %v2397 = vperm.slane %v2389, %v2396
        %v2398 = vrot.slane %v2393, 4
        %v2399 = vsel %vm747, 0.0, %v2398
        %v2401 = vunpack.c.l.s4 1934713408
        %v2402 = vunpack.c.0.s8 %v2401
        %v2403 = vperm.slane %v2393, %v2402
        %v2405 = vunpack.c.l.s4 1934713408
        %v2406 = vunpack.c.0.s8 %v2405
        %v2407 = vperm.slane %v2399, %v2406
        %v2408 = vrot.slane %v2397, 4
        %v2409 = vsel %vm747, 0.0, %v2408
        %v2411 = vunpack.c.l.s4 1934713408
        %v2412 = vunpack.c.0.s8 %v2411
        %v2413 = vperm.slane %v2397, %v2412
        %v2415 = vunpack.c.l.s4 1934713408
        %v2416 = vunpack.c.0.s8 %v2415
        %v2417 = vperm.slane %v2409, %v2416
        %v2418 = vrot.slane %v2403, 4
        %v2419 = vsel %vm747, 0.0, %v2418
        %v2420 = vrot.slane %v2407, 4
        %v2421 = vsel %vm747, 0.0, %v2420
        %v2422 = vrot.slane %v2413, 4
        %v2423 = vsel %vm747, 0.0, %v2422
        %v2424 = vrot.slane %v2417, 4
        %v2425 = vsel %vm747, 0.0, %v2424
        %v2426 = vrot.slane %v742, 4
        %v2427 = vsel %vm747, 0.0, %v2426
        %v2429 = vunpack.c.l.s4 1983009808
        %v2430 = vunpack.c.0.s8 %v2429
        %v2431 = vperm.slane %v742, %v2430
        %v2433 = vunpack.c.l.s4 1983009808
        %v2434 = vunpack.c.0.s8 %v2433
        %v2435 = vperm.slane %v2427, %v2434
        %v2436 = vrot.slane %v2431, 4
        %v2437 = vsel %vm747, 0.0, %v2436
        %v2439 = vunpack.c.l.s4 1934713408
        %v2440 = vunpack.c.0.s8 %v2439
        %v2441 = vperm.slane %v2431, %v2440
        %v2443 = vunpack.c.l.s4 1934713408
        %v2444 = vunpack.c.0.s8 %v2443
        %v2445 = vperm.slane %v2437, %v2444
        %v2446 = vrot.slane %v2435, 4
        %v2447 = vsel %vm747, 0.0, %v2446
        %v2449 = vunpack.c.l.s4 1934713408
        %v2450 = vunpack.c.0.s8 %v2449
        %v2451 = vperm.slane %v2435, %v2450
        %v2453 = vunpack.c.l.s4 1934713408
        %v2454 = vunpack.c.0.s8 %v2453
        %v2455 = vperm.slane %v2447, %v2454
        %v2456 = vrot.slane %v2441, 4
        %v2457 = vsel %vm747, 0.0, %v2456
        %v2458 = vrot.slane %v2445, 4
        %v2459 = vsel %vm747, 0.0, %v2458
        %v2460 = vrot.slane %v2451, 4
        %v2461 = vsel %vm747, 0.0, %v2460
        %v2462 = vrot.slane %v2455, 4
        %v2463 = vsel %vm747, 0.0, %v2462
        %v2464 = vrot.slane %v743, 4
        %v2465 = vsel %vm747, 0.0, %v2464
        %v2467 = vunpack.c.l.s4 1983009808
        %v2468 = vunpack.c.0.s8 %v2467
        %v2469 = vperm.slane %v743, %v2468
        %v2471 = vunpack.c.l.s4 1983009808
        %v2472 = vunpack.c.0.s8 %v2471
        %v2473 = vperm.slane %v2465, %v2472
        %v2474 = vrot.slane %v2469, 4
        %v2475 = vsel %vm747, 0.0, %v2474
        %v2477 = vunpack.c.l.s4 1934713408
        %v2478 = vunpack.c.0.s8 %v2477
        %v2479 = vperm.slane %v2469, %v2478
        %v2481 = vunpack.c.l.s4 1934713408
        %v2482 = vunpack.c.0.s8 %v2481
        %v2483 = vperm.slane %v2475, %v2482
        %v2484 = vrot.slane %v2473, 4
        %v2485 = vsel %vm747, 0.0, %v2484
        %v2487 = vunpack.c.l.s4 1934713408
        %v2488 = vunpack.c.0.s8 %v2487
        %v2489 = vperm.slane %v2473, %v2488
        %v2491 = vunpack.c.l.s4 1934713408
        %v2492 = vunpack.c.0.s8 %v2491
        %v2493 = vperm.slane %v2485, %v2492
        %v2494 = vrot.slane %v2479, 4
        %v2495 = vsel %vm747, 0.0, %v2494
        %v2496 = vrot.slane %v2483, 4
        %v2497 = vsel %vm747, 0.0, %v2496
        %v2498 = vrot.slane %v2489, 4
        %v2499 = vsel %vm747, 0.0, %v2498
        %v2500 = vrot.slane %v2493, 4
        %v2501 = vsel %vm747, 0.0, %v2500
        %v2502 = vrot.slane %v744, 4
        %v2503 = vsel %vm747, 0.0, %v2502
        %v2505 = vunpack.c.l.s4 1983009808
        %v2506 = vunpack.c.0.s8 %v2505
        %v2507 = vperm.slane %v744, %v2506
        %v2509 = vunpack.c.l.s4 1983009808
        %v2510 = vunpack.c.0.s8 %v2509
        %v2511 = vperm.slane %v2503, %v2510
        %v2512 = vrot.slane %v2507, 4
        %v2513 = vsel %vm747, 0.0, %v2512
        %v2515 = vunpack.c.l.s4 1934713408
        %v2516 = vunpack.c.0.s8 %v2515
        %v2517 = vperm.slane %v2507, %v2516
        %v2519 = vunpack.c.l.s4 1934713408
        %v2520 = vunpack.c.0.s8 %v2519
        %v2521 = vperm.slane %v2513, %v2520
        %v2522 = vrot.slane %v2511, 4
        %v2523 = vsel %vm747, 0.0, %v2522
        %v2525 = vunpack.c.l.s4 1934713408
        %v2526 = vunpack.c.0.s8 %v2525
        %v2527 = vperm.slane %v2511, %v2526
        %v2529 = vunpack.c.l.s4 1934713408
        %v2530 = vunpack.c.0.s8 %v2529
        %v2531 = vperm.slane %v2523, %v2530
        %v2532 = vrot.slane %v2517, 4
        %v2533 = vsel %vm747, 0.0, %v2532
        %v2534 = vrot.slane %v2521, 4
        %v2535 = vsel %vm747, 0.0, %v2534
        %v2536 = vrot.slane %v2527, 4
        %v2537 = vsel %vm747, 0.0, %v2536
        %v2538 = vrot.slane %v2531, 4
        %v2539 = vsel %vm747, 0.0, %v2538
        %v2540 = vrot.slane %v745, 4
        %v2541 = vsel %vm747, 0.0, %v2540
        %v2543 = vunpack.c.l.s4 1983009808
        %v2544 = vunpack.c.0.s8 %v2543
        %v2545 = vperm.slane %v745, %v2544
        %v2547 = vunpack.c.l.s4 1983009808
        %v2548 = vunpack.c.0.s8 %v2547
        %v2549 = vperm.slane %v2541, %v2548
        %v2550 = vrot.slane %v2545, 4
        %v2551 = vsel %vm747, 0.0, %v2550
        %v2553 = vunpack.c.l.s4 1934713408
        %v2554 = vunpack.c.0.s8 %v2553
        %v2555 = vperm.slane %v2545, %v2554
        %v2557 = vunpack.c.l.s4 1934713408
        %v2558 = vunpack.c.0.s8 %v2557
        %v2559 = vperm.slane %v2551, %v2558
        %v2560 = vrot.slane %v2549, 4
        %v2561 = vsel %vm747, 0.0, %v2560
        %v2563 = vunpack.c.l.s4 1934713408
        %v2564 = vunpack.c.0.s8 %v2563
        %v2565 = vperm.slane %v2549, %v2564
        %v2567 = vunpack.c.l.s4 1934713408
        %v2568 = vunpack.c.0.s8 %v2567
        %v2569 = vperm.slane %v2561, %v2568
        %v2570 = vrot.slane %v2555, 4
        %v2571 = vsel %vm747, 0.0, %v2570
        %v2572 = vrot.slane %v2559, 4
        %v2573 = vsel %vm747, 0.0, %v2572
        %v2574 = vrot.slane %v2565, 4
        %v2575 = vsel %vm747, 0.0, %v2574
        %v2576 = vrot.slane %v2569, 4
        %v2577 = vsel %vm747, 0.0, %v2576
        %2586 = vrot.lane.b32.xlu0 %v2001, 2
        %v2587 = vpop.permute.xlu0 %2586
        %2588 = vrot.lane.b32.xlu0 %v2077, 2
        %v2589 = vpop.permute.xlu0 %2588
        %2590 = vrot.lane.b32.xlu0 %v2153, 2
        %v2591 = vpop.permute.xlu0 %2590
        %2592 = vrot.lane.b32.xlu0 %v2229, 2
        %v2593 = vpop.permute.xlu0 %2592
        %2594 = vrot.lane.b32.xlu0 %v2305, 2
        %v2595 = vpop.permute.xlu0 %2594
        %2596 = vrot.lane.b32.xlu0 %v2381, 2
        %v2597 = vpop.permute.xlu0 %2596
        %2598 = vrot.lane.b32.xlu0 %v2457, 2
        %v2599 = vpop.permute.xlu0 %2598
        %2600 = vrot.lane.b32.xlu0 %v2533, 2
        %v2601 = vpop.permute.xlu0 %2600
        %2618 = vrot.lane.b32.xlu0 %v1989, 4
        %v2619 = vpop.permute.xlu0 %2618
        %2620 = vrot.lane.b32.xlu0 %v2065, 4
        %v2621 = vpop.permute.xlu0 %2620
        %2622 = vrot.lane.b32.xlu0 %v2141, 4
        %v2623 = vpop.permute.xlu0 %2622
        %2624 = vrot.lane.b32.xlu0 %v2217, 4
        %v2625 = vpop.permute.xlu0 %2624
        %2626 = vrot.lane.b32.xlu0 %v2293, 4
        %v2627 = vpop.permute.xlu0 %2626
        %2628 = vrot.lane.b32.xlu0 %v2369, 4
        %v2629 = vpop.permute.xlu0 %2628
        %2630 = vrot.lane.b32.xlu0 %v2445, 4
        %v2631 = vpop.permute.xlu0 %2630
        %2632 = vrot.lane.b32.xlu0 %v2521, 4
        %v2633 = vpop.permute.xlu0 %2632
        %2650 = vrot.lane.b32.xlu0 %v2003, 6
        %v2651 = vpop.permute.xlu0 %2650
        %2652 = vrot.lane.b32.xlu0 %v2079, 6
        %v2653 = vpop.permute.xlu0 %2652
        %2654 = vrot.lane.b32.xlu0 %v2155, 6
        %v2655 = vpop.permute.xlu0 %2654
        %2656 = vrot.lane.b32.xlu0 %v2231, 6
        %v2657 = vpop.permute.xlu0 %2656
        %2658 = vrot.lane.b32.xlu0 %v2307, 6
        %v2659 = vpop.permute.xlu0 %2658
        %2660 = vrot.lane.b32.xlu0 %v2383, 6
        %v2661 = vpop.permute.xlu0 %2660
        %2662 = vrot.lane.b32.xlu0 %v2459, 6
        %v2663 = vpop.permute.xlu0 %2662
        %2664 = vrot.lane.b32.xlu0 %v2535, 6
        %v2665 = vpop.permute.xlu0 %2664
        %2682 = vrot.lane.b32.xlu0 %v1995, 8
        %v2683 = vpop.permute.xlu0 %2682
        %2684 = vrot.lane.b32.xlu0 %v2071, 8
        %v2685 = vpop.permute.xlu0 %2684
        %2686 = vrot.lane.b32.xlu0 %v2147, 8
        %v2687 = vpop.permute.xlu0 %2686
        %2688 = vrot.lane.b32.xlu0 %v2223, 8
        %v2689 = vpop.permute.xlu0 %2688
        %2690 = vrot.lane.b32.xlu0 %v2299, 8
        %v2691 = vpop.permute.xlu0 %2690
        %2692 = vrot.lane.b32.xlu0 %v2375, 8
        %v2693 = vpop.permute.xlu0 %2692
        %2694 = vrot.lane.b32.xlu0 %v2451, 8
        %v2695 = vpop.permute.xlu0 %2694
        %2696 = vrot.lane.b32.xlu0 %v2527, 8
        %v2697 = vpop.permute.xlu0 %2696
        %2714 = vrot.lane.b32.xlu0 %v2005, 10
        %v2715 = vpop.permute.xlu0 %2714
        %2716 = vrot.lane.b32.xlu0 %v2081, 10
        %v2717 = vpop.permute.xlu0 %2716
        %2718 = vrot.lane.b32.xlu0 %v2157, 10
        %v2719 = vpop.permute.xlu0 %2718
        %2720 = vrot.lane.b32.xlu0 %v2233, 10
        %v2721 = vpop.permute.xlu0 %2720
        %2722 = vrot.lane.b32.xlu0 %v2309, 10
        %v2723 = vpop.permute.xlu0 %2722
        %2724 = vrot.lane.b32.xlu0 %v2385, 10
        %v2725 = vpop.permute.xlu0 %2724
        %2726 = vrot.lane.b32.xlu0 %v2461, 10
        %v2727 = vpop.permute.xlu0 %2726
        %2728 = vrot.lane.b32.xlu0 %v2537, 10
        %v2729 = vpop.permute.xlu0 %2728
        %2746 = vrot.lane.b32.xlu0 %v1999, 12
        %v2747 = vpop.permute.xlu0 %2746
        %2748 = vrot.lane.b32.xlu0 %v2075, 12
        %v2749 = vpop.permute.xlu0 %2748
        %2750 = vrot.lane.b32.xlu0 %v2151, 12
        %v2751 = vpop.permute.xlu0 %2750
        %2752 = vrot.lane.b32.xlu0 %v2227, 12
        %v2753 = vpop.permute.xlu0 %2752
        %2754 = vrot.lane.b32.xlu0 %v2303, 12
        %v2755 = vpop.permute.xlu0 %2754
        %2756 = vrot.lane.b32.xlu0 %v2379, 12
        %v2757 = vpop.permute.xlu0 %2756
        %2758 = vrot.lane.b32.xlu0 %v2455, 12
        %v2759 = vpop.permute.xlu0 %2758
        %2760 = vrot.lane.b32.xlu0 %v2531, 12
        %v2761 = vpop.permute.xlu0 %2760
        %2778 = vrot.lane.b32.xlu0 %v2007, 14
        %v2779 = vpop.permute.xlu0 %2778
        %2780 = vrot.lane.b32.xlu0 %v2083, 14
        %v2781 = vpop.permute.xlu0 %2780
        %2782 = vrot.lane.b32.xlu0 %v2159, 14
        %v2783 = vpop.permute.xlu0 %2782
        %2784 = vrot.lane.b32.xlu0 %v2235, 14
        %v2785 = vpop.permute.xlu0 %2784
        %2786 = vrot.lane.b32.xlu0 %v2311, 14
        %v2787 = vpop.permute.xlu0 %2786
        %2788 = vrot.lane.b32.xlu0 %v2387, 14
        %v2789 = vpop.permute.xlu0 %2788
        %2790 = vrot.lane.b32.xlu0 %v2463, 14
        %v2791 = vpop.permute.xlu0 %2790
        %2792 = vrot.lane.b32.xlu0 %v2539, 14
        %v2793 = vpop.permute.xlu0 %2792
        %2810 = vrot.lane.b32.xlu0 %v2023, 16
        %v2811 = vpop.permute.xlu0 %2810
        %2812 = vrot.lane.b32.xlu0 %v2099, 16
        %v2813 = vpop.permute.xlu0 %2812
        %2814 = vrot.lane.b32.xlu0 %v2175, 16
        %v2815 = vpop.permute.xlu0 %2814
        %2816 = vrot.lane.b32.xlu0 %v2251, 16
        %v2817 = vpop.permute.xlu0 %2816
        %2818 = vrot.lane.b32.xlu0 %v2327, 16
        %v2819 = vpop.permute.xlu0 %2818
        %2820 = vrot.lane.b32.xlu0 %v2403, 16
        %v2821 = vpop.permute.xlu0 %2820
        %2822 = vrot.lane.b32.xlu0 %v2479, 16
        %v2823 = vpop.permute.xlu0 %2822
        %2824 = vrot.lane.b32.xlu0 %v2555, 16
        %v2825 = vpop.permute.xlu0 %2824
        %2842 = vrot.lane.b32.xlu0 %v2039, 18
        %v2843 = vpop.permute.xlu0 %2842
        %2844 = vrot.lane.b32.xlu0 %v2115, 18
        %v2845 = vpop.permute.xlu0 %2844
        %2846 = vrot.lane.b32.xlu0 %v2191, 18
        %v2847 = vpop.permute.xlu0 %2846
        %2848 = vrot.lane.b32.xlu0 %v2267, 18
        %v2849 = vpop.permute.xlu0 %2848
        %2850 = vrot.lane.b32.xlu0 %v2343, 18
        %v2851 = vpop.permute.xlu0 %2850
        %2852 = vrot.lane.b32.xlu0 %v2419, 18
        %v2853 = vpop.permute.xlu0 %2852
        %2854 = vrot.lane.b32.xlu0 %v2495, 18
        %v2855 = vpop.permute.xlu0 %2854
        %2856 = vrot.lane.b32.xlu0 %v2571, 18
        %v2857 = vpop.permute.xlu0 %2856
        %2874 = vrot.lane.b32.xlu0 %v2027, 20
        %v2875 = vpop.permute.xlu0 %2874
        %2876 = vrot.lane.b32.xlu0 %v2103, 20
        %v2877 = vpop.permute.xlu0 %2876
        %2878 = vrot.lane.b32.xlu0 %v2179, 20
        %v2879 = vpop.permute.xlu0 %2878
        %2880 = vrot.lane.b32.xlu0 %v2255, 20
        %v2881 = vpop.permute.xlu0 %2880
        %2882 = vrot.lane.b32.xlu0 %v2331, 20
        %v2883 = vpop.permute.xlu0 %2882
        %2884 = vrot.lane.b32.xlu0 %v2407, 20
        %v2885 = vpop.permute.xlu0 %2884
        %2886 = vrot.lane.b32.xlu0 %v2483, 20
        %v2887 = vpop.permute.xlu0 %2886
        %2888 = vrot.lane.b32.xlu0 %v2559, 20
        %v2889 = vpop.permute.xlu0 %2888
        %2906 = vrot.lane.b32.xlu0 %v2041, 22
        %v2907 = vpop.permute.xlu0 %2906
        %2908 = vrot.lane.b32.xlu0 %v2117, 22
        %v2909 = vpop.permute.xlu0 %2908
        %2910 = vrot.lane.b32.xlu0 %v2193, 22
        %v2911 = vpop.permute.xlu0 %2910
        %2912 = vrot.lane.b32.xlu0 %v2269, 22
        %v2913 = vpop.permute.xlu0 %2912
        %2914 = vrot.lane.b32.xlu0 %v2345, 22
        %v2915 = vpop.permute.xlu0 %2914
        %2916 = vrot.lane.b32.xlu0 %v2421, 22
        %v2917 = vpop.permute.xlu0 %2916
        %2918 = vrot.lane.b32.xlu0 %v2497, 22
        %v2919 = vpop.permute.xlu0 %2918
        %2920 = vrot.lane.b32.xlu0 %v2573, 22
        %v2921 = vpop.permute.xlu0 %2920
        %2938 = vrot.lane.b32.xlu0 %v2033, 24
        %v2939 = vpop.permute.xlu0 %2938
        %2940 = vrot.lane.b32.xlu0 %v2109, 24
        %v2941 = vpop.permute.xlu0 %2940
        %2942 = vrot.lane.b32.xlu0 %v2185, 24
        %v2943 = vpop.permute.xlu0 %2942
        %2944 = vrot.lane.b32.xlu0 %v2261, 24
        %v2945 = vpop.permute.xlu0 %2944
        %2946 = vrot.lane.b32.xlu0 %v2337, 24
        %v2947 = vpop.permute.xlu0 %2946
        %2948 = vrot.lane.b32.xlu0 %v2413, 24
        %v2949 = vpop.permute.xlu0 %2948
        %2950 = vrot.lane.b32.xlu0 %v2489, 24
        %v2951 = vpop.permute.xlu0 %2950
        %2952 = vrot.lane.b32.xlu0 %v2565, 24
        %v2953 = vpop.permute.xlu0 %2952
        %2970 = vrot.lane.b32.xlu0 %v2043, 26
        %v2971 = vpop.permute.xlu0 %2970
        %2972 = vrot.lane.b32.xlu0 %v2119, 26
        %v2973 = vpop.permute.xlu0 %2972
        %2974 = vrot.lane.b32.xlu0 %v2195, 26
        %v2975 = vpop.permute.xlu0 %2974
        %2976 = vrot.lane.b32.xlu0 %v2271, 26
        %v2977 = vpop.permute.xlu0 %2976
        %2978 = vrot.lane.b32.xlu0 %v2347, 26
        %v2979 = vpop.permute.xlu0 %2978
        %2980 = vrot.lane.b32.xlu0 %v2423, 26
        %v2981 = vpop.permute.xlu0 %2980
        %2982 = vrot.lane.b32.xlu0 %v2499, 26
        %v2983 = vpop.permute.xlu0 %2982
        %2984 = vrot.lane.b32.xlu0 %v2575, 26
        %v2985 = vpop.permute.xlu0 %2984
        %3002 = vrot.lane.b32.xlu0 %v2037, 28
        %v3003 = vpop.permute.xlu0 %3002
        %3004 = vrot.lane.b32.xlu0 %v2113, 28
        %v3005 = vpop.permute.xlu0 %3004
        %3006 = vrot.lane.b32.xlu0 %v2189, 28
        %v3007 = vpop.permute.xlu0 %3006
        %3008 = vrot.lane.b32.xlu0 %v2265, 28
        %v3009 = vpop.permute.xlu0 %3008
        %3010 = vrot.lane.b32.xlu0 %v2341, 28
        %v3011 = vpop.permute.xlu0 %3010
        %3012 = vrot.lane.b32.xlu0 %v2417, 28
        %v3013 = vpop.permute.xlu0 %3012
        %3014 = vrot.lane.b32.xlu0 %v2493, 28
        %v3015 = vpop.permute.xlu0 %3014
        %3016 = vrot.lane.b32.xlu0 %v2569, 28
        %v3017 = vpop.permute.xlu0 %3016
        %3034 = vrot.lane.b32.xlu0 %v2045, 30
        %v3035 = vpop.permute.xlu0 %3034
        %3036 = vrot.lane.b32.xlu0 %v2121, 30
        %v3037 = vpop.permute.xlu0 %3036
        %3038 = vrot.lane.b32.xlu0 %v2197, 30
        %v3039 = vpop.permute.xlu0 %3038
        %3040 = vrot.lane.b32.xlu0 %v2273, 30
        %v3041 = vpop.permute.xlu0 %3040
        %3042 = vrot.lane.b32.xlu0 %v2349, 30
        %v3043 = vpop.permute.xlu0 %3042
        %3044 = vrot.lane.b32.xlu0 %v2425, 30
        %v3045 = vpop.permute.xlu0 %3044
        %3046 = vrot.lane.b32.xlu0 %v2501, 30
        %v3047 = vpop.permute.xlu0 %3046
        %3048 = vrot.lane.b32.xlu0 %v2577, 30
        %v3049 = vpop.permute.xlu0 %3048
        %v3058 = vsel %vm1835, %v1985, %v2587
        %v3059 = vsel %vm1835, %v2061, %v2589
        %v3060 = vsel %vm1835, %v2137, %v2591
        %v3061 = vsel %vm1835, %v2213, %v2593
        %v3062 = vsel %vm1835, %v2289, %v2595
        %v3063 = vsel %vm1835, %v2365, %v2597
        %v3064 = vsel %vm1835, %v2441, %v2599
        %v3065 = vsel %vm1835, %v2517, %v2601
        %v3066 = vsel %vm1844, %v3058, %v2619
        %v3067 = vsel %vm1844, %v3059, %v2621
        %v3068 = vsel %vm1844, %v3060, %v2623
        %v3069 = vsel %vm1844, %v3061, %v2625
        %v3070 = vsel %vm1844, %v3062, %v2627
        %v3071 = vsel %vm1844, %v3063, %v2629
        %v3072 = vsel %vm1844, %v3064, %v2631
        %v3073 = vsel %vm1844, %v3065, %v2633
        %v3074 = vsel %vm1853, %v3066, %v2651
        %v3075 = vsel %vm1853, %v3067, %v2653
        %v3076 = vsel %vm1853, %v3068, %v2655
        %v3077 = vsel %vm1853, %v3069, %v2657
        %v3078 = vsel %vm1853, %v3070, %v2659
        %v3079 = vsel %vm1853, %v3071, %v2661
        %v3080 = vsel %vm1853, %v3072, %v2663
        %v3081 = vsel %vm1853, %v3073, %v2665
        %v3082 = vsel %vm1862, %v3074, %v2683
        %v3083 = vsel %vm1862, %v3075, %v2685
        %v3084 = vsel %vm1862, %v3076, %v2687
        %v3085 = vsel %vm1862, %v3077, %v2689
        %v3086 = vsel %vm1862, %v3078, %v2691
        %v3087 = vsel %vm1862, %v3079, %v2693
        %v3088 = vsel %vm1862, %v3080, %v2695
        %v3089 = vsel %vm1862, %v3081, %v2697
        %v3090 = vsel %vm1871, %v3082, %v2715
        %v3091 = vsel %vm1871, %v3083, %v2717
        %v3092 = vsel %vm1871, %v3084, %v2719
        %v3093 = vsel %vm1871, %v3085, %v2721
        %v3094 = vsel %vm1871, %v3086, %v2723
        %v3095 = vsel %vm1871, %v3087, %v2725
        %v3096 = vsel %vm1871, %v3088, %v2727
        %v3097 = vsel %vm1871, %v3089, %v2729
        %v3098 = vsel %vm1880, %v3090, %v2747
        %v3099 = vsel %vm1880, %v3091, %v2749
        %v3100 = vsel %vm1880, %v3092, %v2751
        %v3101 = vsel %vm1880, %v3093, %v2753
        %v3102 = vsel %vm1880, %v3094, %v2755
        %v3103 = vsel %vm1880, %v3095, %v2757
        %v3104 = vsel %vm1880, %v3096, %v2759
        %v3105 = vsel %vm1880, %v3097, %v2761
        %v3106 = vsel %vm1889, %v3098, %v2779
        %v3107 = vsel %vm1889, %v3099, %v2781
        %v3108 = vsel %vm1889, %v3100, %v2783
        %v3109 = vsel %vm1889, %v3101, %v2785
        %v3110 = vsel %vm1889, %v3102, %v2787
        %v3111 = vsel %vm1889, %v3103, %v2789
        %v3112 = vsel %vm1889, %v3104, %v2791
        %v3113 = vsel %vm1889, %v3105, %v2793
        %v3114 = vsel %vm1898, %v3106, %v2811
        %v3115 = vsel %vm1898, %v3107, %v2813
        %v3116 = vsel %vm1898, %v3108, %v2815
        %v3117 = vsel %vm1898, %v3109, %v2817
        %v3118 = vsel %vm1898, %v3110, %v2819
        %v3119 = vsel %vm1898, %v3111, %v2821
        %v3120 = vsel %vm1898, %v3112, %v2823
        %v3121 = vsel %vm1898, %v3113, %v2825
        %v3122 = vsel %vm1907, %v3114, %v2843
        %v3123 = vsel %vm1907, %v3115, %v2845
        %v3124 = vsel %vm1907, %v3116, %v2847
        %v3125 = vsel %vm1907, %v3117, %v2849
        %v3126 = vsel %vm1907, %v3118, %v2851
        %v3127 = vsel %vm1907, %v3119, %v2853
        %v3128 = vsel %vm1907, %v3120, %v2855
        %v3129 = vsel %vm1907, %v3121, %v2857
        %v3130 = vsel %vm1916, %v3122, %v2875
        %v3131 = vsel %vm1916, %v3123, %v2877
        %v3132 = vsel %vm1916, %v3124, %v2879
        %v3133 = vsel %vm1916, %v3125, %v2881
        %v3134 = vsel %vm1916, %v3126, %v2883
        %v3135 = vsel %vm1916, %v3127, %v2885
        %v3136 = vsel %vm1916, %v3128, %v2887
        %v3137 = vsel %vm1916, %v3129, %v2889
        %v3138 = vsel %vm1925, %v3130, %v2907
        %v3139 = vsel %vm1925, %v3131, %v2909
        %v3140 = vsel %vm1925, %v3132, %v2911
        %v3141 = vsel %vm1925, %v3133, %v2913
        %v3142 = vsel %vm1925, %v3134, %v2915
        %v3143 = vsel %vm1925, %v3135, %v2917
        %v3144 = vsel %vm1925, %v3136, %v2919
        %v3145 = vsel %vm1925, %v3137, %v2921
        %v3146 = vsel %vm1934, %v3138, %v2939
        %v3147 = vsel %vm1934, %v3139, %v2941
        %v3148 = vsel %vm1934, %v3140, %v2943
        %v3149 = vsel %vm1934, %v3141, %v2945
        %v3150 = vsel %vm1934, %v3142, %v2947
        %v3151 = vsel %vm1934, %v3143, %v2949
        %v3152 = vsel %vm1934, %v3144, %v2951
        %v3153 = vsel %vm1934, %v3145, %v2953
        %v3154 = vsel %vm1943, %v3146, %v2971
        %v3155 = vsel %vm1943, %v3147, %v2973
        %v3156 = vsel %vm1943, %v3148, %v2975
        %v3157 = vsel %vm1943, %v3149, %v2977
        %v3158 = vsel %vm1943, %v3150, %v2979
        %v3159 = vsel %vm1943, %v3151, %v2981
        %v3160 = vsel %vm1943, %v3152, %v2983
        %v3161 = vsel %vm1943, %v3153, %v2985
        %v3162 = vsel %vm1952, %v3154, %v3003
        %v3163 = vsel %vm1952, %v3155, %v3005
        %v3164 = vsel %vm1952, %v3156, %v3007
        %v3165 = vsel %vm1952, %v3157, %v3009
        %v3166 = vsel %vm1952, %v3158, %v3011
        %v3167 = vsel %vm1952, %v3159, %v3013
        %v3168 = vsel %vm1952, %v3160, %v3015
        %v3169 = vsel %vm1952, %v3161, %v3017
        %v3170 = vsel %vm1961, %v3162, %v3035
        %v3171 = vsel %vm1961, %v3163, %v3037
        %v3172 = vsel %vm1961, %v3164, %v3039
        %v3173 = vsel %vm1961, %v3165, %v3041
        %v3174 = vsel %vm1961, %v3166, %v3043
        %v3175 = vsel %vm1961, %v3167, %v3045
        %v3176 = vsel %vm1961, %v3168, %v3047
        %v3177 = vsel %vm1961, %v3169, %v3049
        %v3186 = vrot.slane %v3170, 7
        %v3187 = vrot.slane %v3171, 7
        %v3188 = vrot.slane %v3172, 7
        %v3189 = vrot.slane %v3173, 7
        %v3190 = vrot.slane %v3174, 7
        %v3191 = vrot.slane %v3175, 7
        %v3192 = vrot.slane %v3176, 7
        %v3193 = vrot.slane %v3177, 7
        %vm3202 = vcmask 1040384
        %v3203 = vsel %vm3202, %v1962, %v3186
        %v3204 = vsel %vm3202, %v1963, %v3187
        %v3205 = vsel %vm3202, %v1964, %v3188
        %v3206 = vsel %vm3202, %v1965, %v3189
        %v3207 = vsel %vm3202, %v1966, %v3190
        %v3208 = vsel %vm3202, %v1967, %v3191
        %v3209 = vsel %vm3202, %v1968, %v3192
        %v3210 = vsel %vm3202, %v1969, %v3193
        %3219 = vst [vmem:[#allocation1] ss:$4 sm:$0xff] %v3203
        %s3220 = scalar_lea.vmem [#allocation1], 1
        %3221 = vst [vmem:[%s3220] ss:$4 sm:$0xff] %v3204
        %s3222 = scalar_lea.vmem [#allocation1], 2
        %3223 = vst [vmem:[%s3222] ss:$4 sm:$0xff] %v3205
        %s3224 = scalar_lea.vmem [#allocation1], 3
        %3225 = vst [vmem:[%s3224] ss:$4 sm:$0xff] %v3206
        %s3226 = scalar_lea.vmem [#allocation1], 32
        %3227 = vst [vmem:[%s3226] ss:$4 sm:$0xff] %v3207
        %s3228 = scalar_lea.vmem [#allocation1], 33
        %3229 = vst [vmem:[%s3228] ss:$4 sm:$0xff] %v3208
        %s3230 = scalar_lea.vmem [#allocation1], 34
        %3231 = vst [vmem:[%s3230] ss:$4 sm:$0xff] %v3209
        %s3232 = scalar_lea.vmem [#allocation1], 35
        %3233 = vst [vmem:[%s3232] ss:$4 sm:$0xff] %v3210
        %v3234 = vld.sshfl [vmem:[#allocation1] sm:$0xff pattern:$0x73625140]
        %v3235 = vld.sshfl [vmem:[#allocation1 + $0x20] sm:$0xff pattern:$0x73625140]
        %vm3238 = vcmask 261120
        %3239 = vst.msk [vmem:[%s234] sm:$0xff] %vm3238, %v3234
        %3240 = vst.msk [vmem:[%s234 + $0x8] sm:$0xff] %vm3238, %v3235
        %s3241 = sand.u32 %s114, 1
        %s3242 = scalar_lea.sflag [#allocation4], %s3241
        %s3243 = sand.u32 %s114, 1
        %s3244 = smul.addr %s3243, 16
        %s3245 = scalar_lea.vmem [#allocation9], %s3244
        // Predicated region
        $region45: #{tpu_custom_call.1} parent=31 // pred_check
          %p3246 = pneg %p124
        $region46: #{tpu_custom_call.1} parent=31 // pred_check_branch
          %3248 = sbr.rel (%p3246) target = $region48
        $region47: #{tpu_custom_call.1} parent=31 // pred_region
          %s3249 = smul.u32 2, %s27
          %3251 = vsyncadd %s3242, 0
          %s3252 = smul.addr %s26, 4
          %s3253 = sadd.s32 %s3249, %s3252
          %s3254 = smul.addr %s3253, 8
          %s3255 = scalar_lea.hbm %s3, %s3254
          %s3256 = sshll.u32 %s3245, 4
          %s3257 = int_to_ptr.vmem [resolvable:$true] %s3256
          %s3258 = sshll.u32 %s3255, 4
          %s3259 = int_to_ptr.hbm [resolvable:$true] %s3258
          %3264 = dma.vmem_to_hbm [thread:$0]  %s3257, 256, %s3259, %s3242, 128, 128, 8
        $region48: #{tpu_custom_call.1} parent=31 // pred_fallthru
          _
      $region32: #{tpu_custom_call.1} parent=5 // pred_fallthru
        _
      %p3265 = scmp.le.s32.totalorder 2, %s17
      // Predicated region
      $region49: #{tpu_custom_call.1} parent=5 // pred_check
        %p3266 = pneg %p3265
      $region50: #{tpu_custom_call.1} parent=5 // pred_check_branch
        %3268 = sbr.rel (%p3266) target = $region52
      $region51: #{tpu_custom_call.1} parent=5 // pred_region
        %s3269 = ssub.s32 %s17, 2
        // Predicated region
        $region53: #{tpu_custom_call.1} parent=51 // pred_check
          %p3270 = pneg %p130
        $region54: #{tpu_custom_call.1} parent=51 // pred_check_branch
          %3272 = sbr.rel (%p3270) target = $region56
        $region55: #{tpu_custom_call.1} parent=51 // pred_region
          %s3273 = sand.u32 %s115, 1
          %s3274 = scalar_lea.sflag [#allocation4], %s3273
          %s3275 = sand.u32 %s115, 1
          %s3276 = smul.addr %s3275, 16
          %s3277 = scalar_lea.vmem [#allocation9], %s3276
          %3279 = dma.done %s3274, 256
        $region56: #{tpu_custom_call.1} parent=51 // pred_fallthru
          _
      $region52: #{tpu_custom_call.1} parent=5 // pred_fallthru
        _
    $region6: #{tpu_custom_call.1} parent=1 // loop_footer
      %s21 = sadd.s32 1, %s17
    $region7: #{tpu_custom_call.1} parent=1 // loop_footer_branch
      %16 = sbr.rel target = $region3
    $region8: #{tpu_custom_call.1} parent=1 // loop_exit
      _
    %3280 = vsyncpa [#allocation3], 1
    %s3281 = scalar_lea.sflag [#allocation3], 1
    %3282 = vsyncpa %s3281, 1
    %3283 = vsyncpa [#allocation4], 1
    %s3284 = scalar_lea.sflag [#allocation4], 1
    %3285 = vsyncpa %s3284, 1
    %3286 = vsyncpa [#allocation5], 1
    %s3287 = scalar_lea.sflag [#allocation5], 1
    %3288 = vsyncpa %s3287, 1
    %3289 = vsyncpa [#allocation7], 1

// kernel: tpu_custom_call.1
$region0: #{tpu_custom_call.1}
  #allocation0 [shape = 'u32[]', space=smem, size = 0x4, offset = 0x4, fixed_abs, tag = 'smem constant byte address 0x4 - core index']
  #allocation1 [shape = 'u32[72,128]{1,0:T(1,128)}', space=vmem, size = 0x9000, scoped, tag = 'internal scratch']
  %s0 = inlined_call_operand.hbm [shape: f32[4,3], index: 0, kind: input, shape index: {}]
  %s1 = inlined_call_operand.hbm [shape: f32[4], index: 1, kind: input, shape index: {}]
  %s2 = inlined_call_operand.hbm [shape: f32[2,3,16,16], index: 2, kind: input, shape index: {}]
  %s3 = inlined_call_operand.hbm [shape: f32[2,4,16,16], index: 3, kind: output, shape index: {}]
  %s4 = sld [smem:[#allocation0]]
  $region57: #{tpu_custom_call.1} parent=0
    _
  %s6 = ssub.s32 1, %s4
  %s7 = scalar_select 0, %s6, %s4
  $region1: #{tpu_custom_call.1} parent=0
    #allocation2 [shape = 'u8[2048]{0}', space=smem, size = 0x800, scoped, tag = 'input window, operand 0, single buffered']
    #allocation3 [shape = 's32[2]{0}', space=sflag, size = 0x8, scoped, tag = 'scoped memory for tpu_custom_call.1']
    #allocation4 [shape = 's32[2]{0}', space=sflag, size = 0x8, scoped, tag = 'scoped memory for tpu_custom_call.1']
    #allocation5 [shape = 's32[2]{0}', space=sflag, size = 0x8, scoped, tag = 'scoped memory for tpu_custom_call.1']
    #allocation6 [shape = 'u8[512]{0}', space=smem, size = 0x200, scoped, tag = 'input window, operand 1, single buffered']
    #allocation7 [shape = 's32[1]{0}', space=sflag, size = 0x4, scoped, tag = 'scoped memory for tpu_custom_call.1']
    #allocation8 [shape = 'u8[24576]{0}', space=vmem, size = 0x6000, scoped, tag = 'input window, operand 2']
    #allocation9 [shape = 'u8[32768]{0}', space=vmem, size = 0x8000, scoped, tag = 'output window, operand 0']
    %8 = vsyncpa [#allocation5], 0
    %9 = vsyncpa [#allocation7], 0
    %10 = vsyncpa [#allocation3], 0
    %s11 = scalar_lea.sflag [#allocation3], 1
    %12 = vsyncpa %s11, 0
    %13 = vsyncpa [#allocation4], 0
    %s14 = scalar_lea.sflag [#allocation4], 1
    %15 = vsyncpa %s14, 0
    loop: start=0, step=1, limit=6
    $region2: #{tpu_custom_call.1} parent=1 // loop_pre_header
      _
    $region3: #{tpu_custom_call.1} parent=1 // loop_header
      %s17 = sphi 0, %s21
      %p18 = scmp.ge.s32.totalorder %s17, 6
      %s24 = sphi 0, %s36
      %s25 = sphi 0, %s32
      %s26 = sphi 0, %s24
      %s27 = sphi 0, %s25
      %s28 = sphi 0, %s26
      %s29 = sphi 0, %s27
      %s37 = sphi 0, %s37
      %s39 = sphi 0, %s37
      %s40 = sphi 0, %s39
      %s54 = sphi 0, %s40
      %s58 = sphi 0, %s58
      %s60 = sphi 0, %s58
      %s61 = sphi 0, %s60
      %s75 = sphi 0, %s61
      %s83 = sphi 0, %s85
      %s86 = sphi 0, %s83
      %s87 = sphi 0, %s86
      %s103 = sphi 0, %s87
      %s111 = sphi 0, %s113
      %s114 = sphi 0, %s111
      %s115 = sphi 0, %s114
      %s131 = sphi 0, %s115
    $region4: #{tpu_custom_call.1} parent=1 // loop_header_branch
      %20 = sbr.rel (%p18) target = $region8
    $region5: #{tpu_custom_call.1} parent=1 // loop_body
      %s22 = ssub.s32 %s17, 1
      %s23 = ssub.s32 %s17, 2
      %s30 = sadd.s32 1, %s25
      %p31 = scmp.ge.s32.totalorder %s30, 2
      %s32 = scalar_select %p31, 0, %s30
      %s33 = sadd.s32 1, %s24
      %s34 = scalar_select %p31, %s33, %s24
      %p35 = scmp.ge.s32.totalorder %s34, 2
      %s36 = scalar_select %p35, 0, %s34
      %s38 = sadd.s32 %s37, 1
      %p41 = scmp.eq.s32.totalorder %s17, 3
      %p42 = scmp.ne.s32.totalorder %s37, %s39
      %p43 = scmp.eq.s32.totalorder %s17, 0
      %p44 = por %p42, %p43
      %p45 = scmp.ne.s32.totalorder %s37, %s39
      %p46 = scmp.eq.s32.totalorder %s22, 3
      %p47 = por %p45, %p46
      %p48 = scmp.ne.s32.totalorder %s39, %s40
      %p49 = scmp.eq.s32.totalorder %s22, 0
      %p50 = por %p48, %p49
      %p51 = scmp.ne.s32.totalorder %s39, %s40
      %p52 = scmp.eq.s32.totalorder %s23, 3
      %p53 = por %p51, %p52
      %p55 = scmp.ne.s32.totalorder %s40, %s54
      %p56 = scmp.eq.s32.totalorder %s23, 0
      %p57 = por %p55, %p56
      %s59 = sadd.s32 %s58, 1
      %p62 = scmp.eq.s32.totalorder %s17, 3
      %p63 = scmp.ne.s32.totalorder %s58, %s60
      %p64 = scmp.eq.s32.totalorder %s17, 0
      %p65 = por %p63, %p64
      %p66 = scmp.ne.s32.totalorder %s58, %s60
      %p67 = scmp.eq.s32.totalorder %s22, 3
      %p68 = por %p66, %p67
      %p69 = scmp.ne.s32.totalorder %s60, %s61
      %p70 = scmp.eq.s32.totalorder %s22, 0
      %p71 = por %p69, %p70
      %p72 = scmp.ne.s32.totalorder %s60, %s61
      %p73 = scmp.eq.s32.totalorder %s23, 3
      %p74 = por %p72, %p73
      %p76 = scmp.ne.s32.totalorder %s61, %s75
      %p77 = scmp.eq.s32.totalorder %s23, 0
      %p78 = por %p76, %p77
      %s79 = ssub.s32 %s24, %s36
      %s80 = ssub.s32 %s25, %s32
      %s81 = sor.u32 %s79, %s80
      %p82 = scmp.eq.s32.totalorder %s81, 0
      %s84 = sadd.s32 %s83, 1
      %s85 = scalar_select %p82, %s83, %s84
      %p88 = pneg %p82
      %p89 = scmp.eq.s32.totalorder %s17, 3
      %p90 = por %p88, %p89
      %p91 = scmp.ne.s32.totalorder %s83, %s86
      %p92 = scmp.eq.s32.totalorder %s17, 0
      %p93 = por %p91, %p92
      %p94 = scmp.ne.s32.totalorder %s83, %s86
      %p95 = scmp.eq.s32.totalorder %s22, 3
      %p96 = por %p94, %p95
      %p97 = scmp.ne.s32.totalorder %s86, %s87
      %p98 = scmp.eq.s32.totalorder %s22, 0
      %p99 = por %p97, %p98
      %p100 = scmp.ne.s32.totalorder %s86, %s87
      %p101 = scmp.eq.s32.totalorder %s23, 3
      %p102 = por %p100, %p101
      %p104 = scmp.ne.s32.totalorder %s87, %s103
      %p105 = scmp.eq.s32.totalorder %s23, 0
      %p106 = por %p104, %p105
      %s107 = ssub.s32 %s24, %s36
      %s108 = ssub.s32 %s25, %s32
      %s109 = sor.u32 %s107, %s108
      %p110 = scmp.eq.s32.totalorder %s109, 0
      %s112 = sadd.s32 %s111, 1
      %s113 = scalar_select %p110, %s111, %s112
      %p116 = pneg %p110
      %p117 = scmp.eq.s32.totalorder %s17, 3
      %p118 = por %p116, %p117
      %p119 = scmp.ne.s32.totalorder %s111, %s114
      %p120 = scmp.eq.s32.totalorder %s17, 0
      %p121 = por %p119, %p120
      %p122 = scmp.ne.s32.totalorder %s111, %s114
      %p123 = scmp.eq.s32.totalorder %s22, 3
      %p124 = por %p122, %p123
      %p125 = scmp.ne.s32.totalorder %s114, %s115
      %p126 = scmp.eq.s32.totalorder %s22, 0
      %p127 = por %p125, %p126
      %p128 = scmp.ne.s32.totalorder %s114, %s115
      %p129 = scmp.eq.s32.totalorder %s23, 3
      %p130 = por %p128, %p129
      %p132 = scmp.ne.s32.totalorder %s115, %s131
      %p133 = scmp.eq.s32.totalorder %s23, 0
      %p134 = por %p132, %p133
      %p135 = scmp.le.s32.totalorder 1, %s17
      %p136 = scmp.lt.s32.totalorder %s17, 5
      %p137 = pnand %p135, %p136
      %p138 = pneg %p137
      // Predicated region
      $region9: #{tpu_custom_call.1} parent=5 // pred_check
        _
      $region10: #{tpu_custom_call.1} parent=5 // pred_check_branch
        %140 = sbr.rel (%p137) target = $region12
      $region11: #{tpu_custom_call.1} parent=5 // pred_region
        %s141 = ssub.s32 %s17, 1
        // Predicated region
        $region13: #{tpu_custom_call.1} parent=11 // pred_check
          %p142 = pneg %p50
        $region14: #{tpu_custom_call.1} parent=11 // pred_check_branch
          %144 = sbr.rel (%p142) target = $region16
        $region15: #{tpu_custom_call.1} parent=11 // pred_region
          %146 = vsyncadd [#allocation5], 0
          %s148 = sshll.u32 %s0, 4
          %s149 = int_to_ptr.hbm [resolvable:$true] %s148
          %151 = dma.hbm_to_smem %s149, 64, [#allocation2], [#allocation5]
        $region16: #{tpu_custom_call.1} parent=11 // pred_fallthru
          _
        // Predicated region
        $region17: #{tpu_custom_call.1} parent=11 // pred_check
          %p152 = pneg %p71
        $region18: #{tpu_custom_call.1} parent=11 // pred_check_branch
          %154 = sbr.rel (%p152) target = $region20
        $region19: #{tpu_custom_call.1} parent=11 // pred_region
          %156 = vsyncadd [#allocation7], 0
          %s158 = sshll.u32 %s1, 4
          %s159 = int_to_ptr.hbm [resolvable:$true] %s158
          %161 = dma.hbm_to_smem %s159, 16, [#allocation6], [#allocation7]
        $region20: #{tpu_custom_call.1} parent=11 // pred_fallthru
          _
      $region12: #{tpu_custom_call.1} parent=5 // pred_fallthru
        _
      %p162 = scmp.lt.s32.totalorder %s17, 4
      // Predicated region
      $region21: #{tpu_custom_call.1} parent=5 // pred_check
        %p163 = pneg %p162
      $region22: #{tpu_custom_call.1} parent=5 // pred_check_branch
        %165 = sbr.rel (%p163) target = $region24
      $region23: #{tpu_custom_call.1} parent=5 // pred_region
        // Predicated region
        $region25: #{tpu_custom_call.1} parent=23 // pred_check
          %p166 = pneg %p93
        $region26: #{tpu_custom_call.1} parent=23 // pred_check_branch
          %168 = sbr.rel (%p166) target = $region28
        $region27: #{tpu_custom_call.1} parent=23 // pred_region
          %s169 = sand.u32 %s83, 1
          %s170 = scalar_lea.sflag [#allocation3], %s169
          %s171 = sand.u32 %s83, 1
          %s172 = smul.addr %s171, 24
          %s173 = scalar_lea.vmem [#allocation8], %s172
          %175 = vsyncadd %s170, 0
          %s176 = smul.addr %s24, 6
          %s177 = sadd.s32 %s25, %s176
          %s178 = smul.addr %s177, 8
          %s179 = scalar_lea.hbm %s2, %s178
          %s180 = sshll.u32 %s179, 4
          %s181 = int_to_ptr.hbm [resolvable:$true] %s180
          %s182 = sshll.u32 %s173, 4
          %s183 = int_to_ptr.vmem [resolvable:$true] %s182
          %188 = dma.hbm_to_vmem [thread:$0]  %s181, 384, %s183, %s170, 256, 128, 8
        $region28: #{tpu_custom_call.1} parent=23 // pred_fallthru
          _
      $region24: #{tpu_custom_call.1} parent=5 // pred_fallthru
        _
      %p189 = scmp.le.s32.totalorder 1, %s17
      %p190 = scmp.lt.s32.totalorder %s17, 5
      %p191 = pnand %p189, %p190
      %p192 = pneg %p191
      // Predicated region
      $region29: #{tpu_custom_call.1} parent=5 // pred_check
        _
      $region30: #{tpu_custom_call.1} parent=5 // pred_check_branch
        %194 = sbr.rel (%p191) target = $region32
      $region31: #{tpu_custom_call.1} parent=5 // pred_region
        %s195 = ssub.s32 %s17, 1
        // Predicated region
        $region33: #{tpu_custom_call.1} parent=31 // pred_check
          %p196 = pneg %p50
        $region34: #{tpu_custom_call.1} parent=31 // pred_check_branch
          %198 = sbr.rel (%p196) target = $region36
        $region35: #{tpu_custom_call.1} parent=31 // pred_region
          %200 = dma.done [#allocation5], 64
        $region36: #{tpu_custom_call.1} parent=31 // pred_fallthru
          _
        // Predicated region
        $region37: #{tpu_custom_call.1} parent=31 // pred_check
          %p201 = pneg %p71
        $region38: #{tpu_custom_call.1} parent=31 // pred_check_branch
          %203 = sbr.rel (%p201) target = $region40
        $region39: #{tpu_custom_call.1} parent=31 // pred_region
          %205 = dma.done [#allocation7], 16
        $region40: #{tpu_custom_call.1} parent=31 // pred_fallthru
          _
        %s206 = sand.u32 %s86, 1
        %s207 = scalar_lea.sflag [#allocation3], %s206
        %s208 = sand.u32 %s86, 1
        %s209 = smul.addr %s208, 24
        %s210 = scalar_lea.vmem [#allocation8], %s209
        // Predicated region
        $region41: #{tpu_custom_call.1} parent=31 // pred_check
          %p211 = pneg %p99
        $region42: #{tpu_custom_call.1} parent=31 // pred_check_branch
          %213 = sbr.rel (%p211) target = $region44
        $region43: #{tpu_custom_call.1} parent=31 // pred_region
          %215 = dma.done %s207, 384
        $region44: #{tpu_custom_call.1} parent=31 // pred_fallthru
          _
        %216 = sfence
        %p217 = pneg %p50
        %p218 = pneg %p47
        %p219 = pneg %p71
        %p220 = pneg %p68
        %s221 = sand.u32 %s86, 1
        %s222 = scalar_lea.sflag [#allocation3], %s221
        %s223 = sand.u32 %s86, 1
        %s224 = smul.addr %s223, 24
        %s225 = scalar_lea.vmem [#allocation8], %s224
        %p226 = pneg %p99
        %p227 = pneg %p96
        %p228 = pneg %p127
        %p229 = pneg %p124
        %s230 = sand.u32 %s114, 1
        %s231 = scalar_lea.sflag [#allocation4], %s230
        %s232 = sand.u32 %s114, 1
        %s233 = smul.addr %s232, 32
        %s234 = scalar_lea.vmem [#allocation9], %s233
        %v235 = vld [vmem:[%s210] sm:$0xff]
        %s236 = scalar_lea.vmem %s210, 8 [#allocation8]
        %v237 = vld [vmem:[%s236] sm:$0xff]
        %s238 = scalar_lea.vmem %s210, 16 [#allocation8]
        %v239 = vld [vmem:[%s238] sm:$0xff]
        %s240 = sld [smem:[#allocation2]]
        %v241 = vstv %s240
        %v242 = vmul.f32 %v241, %v235
        %s243 = sld [smem:[#allocation2 + $0x1]]
        %v244 = vstv %s243
        %v245 = vmul.f32 %v244, %v237
        %v246 = vadd.f32 %v242, %v245
        %s247 = sld [smem:[#allocation2 + $0x2]]
        %v248 = vstv %s247
        %v249 = vmul.f32 %v248, %v239
        %v250 = vadd.f32 %v246, %v249
        %s251 = sld [smem:[#allocation6]]
        %v252 = vstv %s251
        %v253 = vadd.f32 %v250, %v252
        %s254 = sld [smem:[#allocation2 + $0x80]]
        %v255 = vstv %s254
        %v256 = vmul.f32 %v255, %v235
        %s257 = sld [smem:[#allocation2 + $0x81]]
        %v258 = vstv %s257
        %v259 = vmul.f32 %v258, %v237
        %v260 = vadd.f32 %v256, %v259
        %s261 = sld [smem:[#allocation2 + $0x82]]
        %v262 = vstv %s261
        %v263 = vmul.f32 %v262, %v239
        %v264 = vadd.f32 %v260, %v263
        %s265 = sld [smem:[#allocation6 + $0x1]]
        %v266 = vstv %s265
        %v267 = vadd.f32 %v264, %v266
        %s268 = sld [smem:[#allocation2 + $0x100]]
        %v269 = vstv %s268
        %v270 = vmul.f32 %v269, %v235
        %s271 = sld [smem:[#allocation2 + $0x101]]
        %v272 = vstv %s271
        %v273 = vmul.f32 %v272, %v237
        %v274 = vadd.f32 %v270, %v273
        %s275 = sld [smem:[#allocation2 + $0x102]]
        %v276 = vstv %s275
        %v277 = vmul.f32 %v276, %v239
        %v278 = vadd.f32 %v274, %v277
        %s279 = sld [smem:[#allocation6 + $0x2]]
        %v280 = vstv %s279
        %v281 = vadd.f32 %v278, %v280
        %s282 = sld [smem:[#allocation2 + $0x180]]
        %v283 = vstv %s282
        %v284 = vmul.f32 %v283, %v235
        %s285 = sld [smem:[#allocation2 + $0x181]]
        %v286 = vstv %s285
        %v287 = vmul.f32 %v286, %v237
        %v288 = vadd.f32 %v284, %v287
        %s289 = sld [smem:[#allocation2 + $0x182]]
        %v290 = vstv %s289
        %v291 = vmul.f32 %v290, %v239
        %v292 = vadd.f32 %v288, %v291
        %s293 = sld [smem:[#allocation6 + $0x3]]
        %v294 = vstv %s293
        %v295 = vadd.f32 %v292, %v294
        %vm296 = vcmask 130048
        %297 = vst.msk [vmem:[%s234] sm:$0xff] %vm296, %v253
        %s298 = scalar_lea.vmem %s234, 8 [#allocation9]
        %299 = vst.msk [vmem:[%s298] sm:$0xff] %vm296, %v267
        %s300 = scalar_lea.vmem %s234, 16 [#allocation9]
        %301 = vst.msk [vmem:[%s300] sm:$0xff] %vm296, %v281
        %s302 = scalar_lea.vmem %s234, 24 [#allocation9]
        %303 = vst.msk [vmem:[%s302] sm:$0xff] %vm296, %v295
        %s304 = sand.u32 %s114, 1
        %s305 = scalar_lea.sflag [#allocation4], %s304
        %s306 = sand.u32 %s114, 1
        %s307 = smul.addr %s306, 32
        %s308 = scalar_lea.vmem [#allocation9], %s307
        // Predicated region
        $region45: #{tpu_custom_call.1} parent=31 // pred_check
          %p309 = pneg %p124
        $region46: #{tpu_custom_call.1} parent=31 // pred_check_branch
          %311 = sbr.rel (%p309) target = $region48
        $region47: #{tpu_custom_call.1} parent=31 // pred_region
          %313 = vsyncadd %s305, 0
          %s314 = smul.addr %s26, 8
          %s315 = sadd.s32 %s27, %s314
          %s316 = smul.addr %s315, 8
          %s317 = scalar_lea.hbm %s3, %s316
          %s318 = sshll.u32 %s308, 4
          %s319 = int_to_ptr.vmem [resolvable:$true] %s318
          %s320 = sshll.u32 %s317, 4
          %s321 = int_to_ptr.hbm [resolvable:$true] %s320
          %326 = dma.vmem_to_hbm [thread:$0]  %s319, 512, %s321, %s305, 128, 256, 8
        $region48: #{tpu_custom_call.1} parent=31 // pred_fallthru
          _
      $region32: #{tpu_custom_call.1} parent=5 // pred_fallthru
        _
      %p327 = scmp.le.s32.totalorder 2, %s17
      // Predicated region
      $region49: #{tpu_custom_call.1} parent=5 // pred_check
        %p328 = pneg %p327
      $region50: #{tpu_custom_call.1} parent=5 // pred_check_branch
        %330 = sbr.rel (%p328) target = $region52
      $region51: #{tpu_custom_call.1} parent=5 // pred_region
        %s331 = ssub.s32 %s17, 2
        // Predicated region
        $region53: #{tpu_custom_call.1} parent=51 // pred_check
          %p332 = pneg %p130
        $region54: #{tpu_custom_call.1} parent=51 // pred_check_branch
          %334 = sbr.rel (%p332) target = $region56
        $region55: #{tpu_custom_call.1} parent=51 // pred_region
          %s335 = sand.u32 %s115, 1
          %s336 = scalar_lea.sflag [#allocation4], %s335
          %s337 = sand.u32 %s115, 1
          %s338 = smul.addr %s337, 32
          %s339 = scalar_lea.vmem [#allocation9], %s338
          %341 = dma.done %s336, 512
        $region56: #{tpu_custom_call.1} parent=51 // pred_fallthru
          _
      $region52: #{tpu_custom_call.1} parent=5 // pred_fallthru
        _
    $region6: #{tpu_custom_call.1} parent=1 // loop_footer
      %s21 = sadd.s32 1, %s17
    $region7: #{tpu_custom_call.1} parent=1 // loop_footer_branch
      %16 = sbr.rel target = $region3
    $region8: #{tpu_custom_call.1} parent=1 // loop_exit
      _
    %342 = vsyncpa [#allocation3], 1
    %s343 = scalar_lea.sflag [#allocation3], 1
    %344 = vsyncpa %s343, 1
    %345 = vsyncpa [#allocation4], 1
    %s346 = scalar_lea.sflag [#allocation4], 1
    %347 = vsyncpa %s346, 1
    %348 = vsyncpa [#allocation5], 1
    %s349 = scalar_lea.sflag [#allocation5], 1
    %350 = vsyncpa %s349, 1
    %351 = vsyncpa [#allocation7], 1

</llo_original>
